<compile_context>
chip_gen: v5e
topology: v5e:2x2
jax: 0.10.0
libtpu: 0.0.40
codegen_flags: <defaults>
</compile_context>

<pallas_src>
import jax
import jax.numpy as jnp
from jax import lax
from jax.experimental import pallas as pl
from jax.experimental.pallas import tpu as pltpu


# ---------------------------------------------------------------------------
# Kernel
# ---------------------------------------------------------------------------
def pinn_kernel(x_ref, w_int_ref, b_int_ref, w_hid_ref, b_hid_ref,
                w_out_ref, b_out_ref, o_ref):
    x = x_ref[...]                                   # (TB, 2) f32

    # ---- Input layer on the VPU (K=2 would waste ~98% of an MXU pass) ----
    # h = tanh(x[:,0:1]*W[0] + x[:,1:2]*W[1] + b)    -> (TB, H)
    h = jnp.tanh(
        x[:, 0:1] * w_int_ref[0:1, :]
        + x[:, 1:2] * w_int_ref[1:2, :]
        + b_int_ref[...]
    )

    nb_layer = w_hid_ref.shape[0]
    mm_dtype = w_hid_ref.dtype                       # bf16 on v6e/v7x, f32 on v5e

    # ---- Hidden layers on the MXU: (TB,H) @ (H,H) + (1,H) -> tanh ----
    # Inputs cast to the weight dtype (no-op when f32); accumulation stays f32.
    def body(i, h):
        w = w_hid_ref[i]                             # (H, H) mm_dtype
        b = b_hid_ref[i]                             # (1, H) f32
        acc = jnp.dot(h.astype(mm_dtype), w, preferred_element_type=jnp.float32)
        return jnp.tanh(acc + b)

    h = lax.fori_loop(0, nb_layer, body, h, unroll=True)

    # ---- Output layer on the VPU/XLU (N=1 matmul would pad to 128 cols) ----
    # z_col[t] = sum_h h[t,h] * w_out[h]             -> (TB, 1) column
    z_col = jnp.sum(h * w_out_ref[...], axis=-1, keepdims=True)
    # Lane-dense store path: transpose the column to a (1, TB) row, then
    # sigmoid on dense vregs and an unmasked store.
    z_row = jnp.transpose(z_col, (1, 0)) + b_out_ref[0]          # (1, TB)
    o_ref[0] = jax.nn.sigmoid(z_row)                              # (1, 1, TB) block


# ---------------------------------------------------------------------------
# Wrapper
# ---------------------------------------------------------------------------
def _cdiv(a, b):
    return -(-a // b)


def _round_up(x, m):
    return ((x + m - 1) // m) * m


def _tpu_generation(default=6):
    """Best-effort TPU generation from device_kind (e.g. 'TPU v5e' -> 5)."""
    try:
        kind = jax.devices()[0].device_kind.lower().replace(" ", "")
    except Exception:
        return default
    for g in (7, 6, 5, 4, 3):
        if (f"v{g}" in kind) or (f"tpu{g}" in kind):
            return g
    return default


def pinn_forward(x, params, *, tile_b=None, matmul_dtype=None):
    """x: (B, 2) float32.  params: dict of pre-transposed f32 weights/biases."""
    B, in_dim = x.shape
    assert in_dim == 2

    gen = _tpu_generation()
    # bf16 MXU inputs on v6e/v7x; full f32 on v5e and older (no bf16 VPU/EUP,
    # 4x128^2 MXU already matches H=128 natively).
    if matmul_dtype is None:
        matmul_dtype = jnp.bfloat16 if gen >= 6 else jnp.float32
    # v7x (and v4 megacore) expose 2 TensorCores; v5e/v6e are single-core.
    num_tc = 2 if gen in (4, 7) else 1

    w_int, b_int = params["w_int"], params["b_int"]       # (2,H), (1,H)
    w_hid, b_hid = params["w_hid"], params["b_hid"]       # (L,H,H), (L,1,H)
    w_out, b_out = params["w_out"], params["b_out"]       # (1,H), (1,1)
    L, H, _ = w_hid.shape

    w_hid_mm = w_hid.astype(matmul_dtype)                 # MXU input dtype only

    # --- Batch tile selection -------------------------------------------
    # Single-core: one big tile (amortizes per-step overhead + per-dot RHS
    # pushes).  v7x: an even number of equal tiles across the 2 TCs.
    # Cap 2048 rows (~1 MiB f32 activations at H=128), well inside VMEM.
    if tile_b is None:
        cap = 2048
        n_tiles = max(num_tc, _cdiv(B, cap))
        n_tiles = _round_up(n_tiles, num_tc)
        tb = _round_up(_cdiv(B, n_tiles), 8)
    else:
        tb = _round_up(max(8, int(tile_b)), 8)
    num_tiles = _cdiv(B, tb)
    if num_tc > 1:
        num_tiles = _round_up(num_tiles, num_tc)          # keep both TCs fed
    B_pad = num_tiles * tb
    if B_pad != B:
        x = jnp.pad(x, ((0, B_pad - B), (0, 0)))

    # Grid-invariant (whole-array) blocks for weights/biases.
    def full_spec(*shape):
        return pl.BlockSpec(shape, lambda i: (0,) * len(shape))

    out = pl.pallas_call(
        pinn_kernel,
        # Lane-dense output slab: one (1, tb) row per tile.
        out_shape=jax.ShapeDtypeStruct((num_tiles, 1, tb), jnp.float32),
        grid_spec=pltpu.PrefetchScalarGridSpec(
            num_scalar_prefetch=0,
            grid=(num_tiles,),
            in_specs=[
                pl.BlockSpec((tb, 2), lambda i: (i, 0)),            # x tile
                full_spec(2, H),                                    # w_int
                full_spec(1, H),                                    # b_int
                full_spec(L, H, H),                                 # w_hid
                full_spec(L, 1, H),                                 # b_hid
                full_spec(1, H),                                    # w_out row
                pl.BlockSpec(memory_space=pltpu.MemorySpace.SMEM),  # b_out scalar
            ],
            out_specs=pl.BlockSpec((1, 1, tb), lambda i: (i, 0, 0)),
        ),
        compiler_params=pltpu.CompilerParams(
            dimension_semantics=("parallel",)                       # megacore on v7x
        ),
    )(x, w_int, b_int, w_hid_mm, b_hid, w_out, b_out.reshape(-1))

    return out.reshape(-1)[:B].reshape(B, 1)


# ---------------------------------------------------------------------------
# Params / reference
# ---------------------------------------------------------------------------
def init_params(key, nb_layer, hidden_layer):
    """Deterministic init mimicking PyTorch nn.Linear default:
    U(-1/sqrt(fan_in), 1/sqrt(fan_in)) for both weight and bias.
    Weights are stored pre-transposed as (in, out); w_out as a (1, H) row."""
    keys = jax.random.split(key, 2 + 2 * nb_layer + 2)

    def lin(kw, kb, fan_in, fan_out):
        bound = 1.0 / (fan_in ** 0.5)
        w = jax.random.uniform(kw, (fan_in, fan_out), jnp.float32, -bound, bound)
        b = jax.random.uniform(kb, (1, fan_out), jnp.float32, -bound, bound)
        return w, b

    w_int, b_int = lin(keys[0], keys[1], 2, hidden_layer)
    w_hid_list, b_hid_list = [], []
    for l in range(nb_layer):
        w, b = lin(keys[2 + 2 * l], keys[3 + 2 * l], hidden_layer, hidden_layer)
        w_hid_list.append(w)
        b_hid_list.append(b)
    w_out, b_out = lin(keys[-2], keys[-1], hidden_layer, 1)

    return {
        "w_int": w_int, "b_int": b_int,
        "w_hid": jnp.stack(w_hid_list, axis=0),                 # (L, H, H)
        "b_hid": jnp.stack(b_hid_list, axis=0),                 # (L, 1, H)
        "w_out": w_out.T,                                       # (1, H) row
        "b_out": b_out,                                         # (1, 1)
    }


def pinn_forward_ref(x, params):
    """Pure-JAX f32 reference for correctness checking."""
    h = jnp.tanh(x @ params["w_int"] + params["b_int"])
    for l in range(params["w_hid"].shape[0]):
        h = jnp.tanh(h @ params["w_hid"][l] + params["b_hid"][l])
    return jax.nn.sigmoid(h @ params["w_out"].T + params["b_out"])


if __name__ == "__main__":
    nb_layer = 3
    hidden_layer = 128      # lane-aligned (multiple of 128)
    rayon_R_norm = 1.0      # stored on the PyTorch module, unused in forward
    coeff_normal = 1.0      # stored on the PyTorch module, unused in forward

    key = jax.random.PRNGKey(0)
    pkey, xkey = jax.random.split(key)
    params = init_params(pkey, nb_layer, hidden_layer)

    batch = 512             # v5e/v6e: 1 tile of 512; v7x: 2 tiles of 256
    x = jax.random.uniform(xkey, (batch, 2), jnp.float32)   # (r, t) inputs

    out = pinn_forward(x, params)
    out = jax.block_until_ready(out)

    ref = pinn_forward_ref(x, params)
    assert out.shape == (batch, 1) and out.dtype == jnp.float32
    # bf16 MXU inputs on v6e/v7x need a looser tolerance vs. the f32 reference.
    tol = 3e-2 if _tpu_generation() >= 6 else 1e-5
    err = float(jnp.max(jnp.abs(out - ref)))
    assert jnp.allclose(out, ref, atol=tol, rtol=tol), f"max abs err {err}"

    print("KERNEL_OK")
</pallas_src>

<mosaic_0001>
module attributes {stable_mosaic.version = 11 : i64} {
  func.func @pinn_kernel(%arg0: i32, %arg1: memref<512x2xf32, #tpu.memory_space<vmem>>, %arg2: memref<2x128xf32, #tpu.memory_space<vmem>>, %arg3: memref<1x128xf32, #tpu.memory_space<vmem>>, %arg4: memref<3x128x128xbf16, #tpu.memory_space<vmem>>, %arg5: memref<3x1x128xf32, #tpu.memory_space<vmem>>, %arg6: memref<1x128xf32, #tpu.memory_space<vmem>>, %arg7: memref<1xf32, #tpu.memory_space<smem>>, %arg8: memref<1x1x512xf32, #tpu.memory_space<vmem>>) attributes {dimension_semantics = [#tpu.dimension_semantics<parallel>], iteration_bounds = array<i64: 1>, scalar_prefetch = 0 : i64, scratch_operands = 0 : i64, tpu.core_type = #tpu.core_type<tc>, window_params = [{transform_indices = @transform_0, window_bounds = array<i64: 512, 2>}, {pipeline_mode = #tpu.pipeline_mode<synchronous>, transform_indices = @transform_1, window_bounds = array<i64: 2, 128>}, {pipeline_mode = #tpu.pipeline_mode<synchronous>, transform_indices = @transform_2, window_bounds = array<i64: 1, 128>}, {pipeline_mode = #tpu.pipeline_mode<synchronous>, transform_indices = @transform_3, window_bounds = array<i64: 3, 128, 128>}, {pipeline_mode = #tpu.pipeline_mode<synchronous>, transform_indices = @transform_4, window_bounds = array<i64: 3, 1, 128>}, {pipeline_mode = #tpu.pipeline_mode<synchronous>, transform_indices = @transform_5, window_bounds = array<i64: 1, 128>}, {transform_indices = @transform_6, window_bounds = array<i64: 1>}, {transform_indices = @transform_7, window_bounds = array<i64: 1, 1, 512>}]} {
    %c0 = arith.constant 0 : index
    %c0_0 = arith.constant 0 : index
    %0 = vector.load %arg1[%c0, %c0_0] : memref<512x2xf32, #tpu.memory_space<vmem>>, vector<512x2xf32>
    %1 = vector.extract_strided_slice %0 {offsets = [0, 0], sizes = [512, 1], strides = [1, 1]} : vector<512x2xf32> to vector<512x1xf32>
    %c0_1 = arith.constant 0 : index
    %c0_2 = arith.constant 0 : index
    %2 = vector.load %arg2[%c0_1, %c0_2] : memref<2x128xf32, #tpu.memory_space<vmem>>, vector<1x128xf32>
    %3 = vector.broadcast %1 : vector<512x1xf32> to vector<512x128xf32>
    %4 = vector.broadcast %2 : vector<1x128xf32> to vector<512x128xf32>
    %5 = arith.mulf %3, %4 : vector<512x128xf32>
    %6 = vector.extract_strided_slice %0 {offsets = [0, 1], sizes = [512, 1], strides = [1, 1]} : vector<512x2xf32> to vector<512x1xf32>
    %c1 = arith.constant 1 : index
    %c0_3 = arith.constant 0 : index
    %7 = vector.load %arg2[%c1, %c0_3] : memref<2x128xf32, #tpu.memory_space<vmem>>, vector<1x128xf32>
    %8 = vector.broadcast %6 : vector<512x1xf32> to vector<512x128xf32>
    %9 = vector.broadcast %7 : vector<1x128xf32> to vector<512x128xf32>
    %10 = arith.mulf %8, %9 : vector<512x128xf32>
    %11 = arith.addf %5, %10 : vector<512x128xf32>
    %c0_4 = arith.constant 0 : index
    %c0_5 = arith.constant 0 : index
    %12 = vector.load %arg3[%c0_4, %c0_5] : memref<1x128xf32, #tpu.memory_space<vmem>>, vector<1x128xf32>
    %13 = vector.broadcast %12 : vector<1x128xf32> to vector<512x128xf32>
    %14 = arith.addf %11, %13 : vector<512x128xf32>
    %15 = math.tanh %14 : vector<512x128xf32>
    %c0_i32 = arith.constant 0 : i32
    %16 = arith.index_cast %c0_i32 : i32 to index
    %c0_6 = arith.constant 0 : index
    %c0_7 = arith.constant 0 : index
    %17 = vector.load %arg4[%16, %c0_6, %c0_7] : memref<3x128x128xbf16, #tpu.memory_space<vmem>>, vector<1x128x128xbf16>
    %18 = vector.shape_cast %17 : vector<1x128x128xbf16> to vector<128x128xbf16>
    %19 = arith.index_cast %c0_i32 : i32 to index
    %c0_8 = arith.constant 0 : index
    %c0_9 = arith.constant 0 : index
    %20 = vector.load %arg5[%19, %c0_8, %c0_9] : memref<3x1x128xf32, #tpu.memory_space<vmem>>, vector<1x1x128xf32>
    %21 = vector.shape_cast %20 : vector<1x1x128xf32> to vector<1x128xf32>
    %22 = arith.truncf %15 : vector<512x128xf32> to vector<512x128xbf16>
    %cst = arith.constant dense<0.000000e+00> : vector<512x128xf32>
    %23 = tpu.matmul %22, %18, %cst {dimension_numbers = #tpu.dot_dimension_numbers<[1], [0], [0], [1], [0, 0, 1, 1], [], []>} : vector<512x128xbf16>, vector<128x128xbf16>, vector<512x128xf32> -> vector<512x128xf32>
    %24 = vector.broadcast %21 : vector<1x128xf32> to vector<512x128xf32>
    %25 = arith.addf %23, %24 : vector<512x128xf32>
    %26 = math.tanh %25 : vector<512x128xf32>
    %c1_i32 = arith.constant 1 : i32
    %27 = arith.index_cast %c1_i32 : i32 to index
    %c0_10 = arith.constant 0 : index
    %c0_11 = arith.constant 0 : index
    %28 = vector.load %arg4[%27, %c0_10, %c0_11] : memref<3x128x128xbf16, #tpu.memory_space<vmem>>, vector<1x128x128xbf16>
    %29 = vector.shape_cast %28 : vector<1x128x128xbf16> to vector<128x128xbf16>
    %30 = arith.index_cast %c1_i32 : i32 to index
    %c0_12 = arith.constant 0 : index
    %c0_13 = arith.constant 0 : index
    %31 = vector.load %arg5[%30, %c0_12, %c0_13] : memref<3x1x128xf32, #tpu.memory_space<vmem>>, vector<1x1x128xf32>
    %32 = vector.shape_cast %31 : vector<1x1x128xf32> to vector<1x128xf32>
    %33 = arith.truncf %26 : vector<512x128xf32> to vector<512x128xbf16>
    %cst_14 = arith.constant dense<0.000000e+00> : vector<512x128xf32>
    %34 = tpu.matmul %33, %29, %cst_14 {dimension_numbers = #tpu.dot_dimension_numbers<[1], [0], [0], [1], [0, 0, 1, 1], [], []>} : vector<512x128xbf16>, vector<128x128xbf16>, vector<512x128xf32> -> vector<512x128xf32>
    %35 = vector.broadcast %32 : vector<1x128xf32> to vector<512x128xf32>
    %36 = arith.addf %34, %35 : vector<512x128xf32>
    %37 = math.tanh %36 : vector<512x128xf32>
    %c2_i32 = arith.constant 2 : i32
    %38 = arith.index_cast %c2_i32 : i32 to index
    %c0_15 = arith.constant 0 : index
    %c0_16 = arith.constant 0 : index
    %39 = vector.load %arg4[%38, %c0_15, %c0_16] : memref<3x128x128xbf16, #tpu.memory_space<vmem>>, vector<1x128x128xbf16>
    %40 = vector.shape_cast %39 : vector<1x128x128xbf16> to vector<128x128xbf16>
    %41 = arith.index_cast %c2_i32 : i32 to index
    %c0_17 = arith.constant 0 : index
    %c0_18 = arith.constant 0 : index
    %42 = vector.load %arg5[%41, %c0_17, %c0_18] : memref<3x1x128xf32, #tpu.memory_space<vmem>>, vector<1x1x128xf32>
    %43 = vector.shape_cast %42 : vector<1x1x128xf32> to vector<1x128xf32>
    %44 = arith.truncf %37 : vector<512x128xf32> to vector<512x128xbf16>
    %cst_19 = arith.constant dense<0.000000e+00> : vector<512x128xf32>
    %45 = tpu.matmul %44, %40, %cst_19 {dimension_numbers = #tpu.dot_dimension_numbers<[1], [0], [0], [1], [0, 0, 1, 1], [], []>} : vector<512x128xbf16>, vector<128x128xbf16>, vector<512x128xf32> -> vector<512x128xf32>
    %46 = vector.broadcast %43 : vector<1x128xf32> to vector<512x128xf32>
    %47 = arith.addf %45, %46 : vector<512x128xf32>
    %48 = math.tanh %47 : vector<512x128xf32>
    %c3_i32 = arith.constant 3 : i32
    %c0_20 = arith.constant 0 : index
    %c0_21 = arith.constant 0 : index
    %49 = vector.load %arg6[%c0_20, %c0_21] : memref<1x128xf32, #tpu.memory_space<vmem>>, vector<1x128xf32>
    %50 = vector.broadcast %49 : vector<1x128xf32> to vector<512x128xf32>
    %51 = arith.mulf %48, %50 : vector<512x128xf32>
    %cst_22 = arith.constant dense<0.000000e+00> : vector<512xf32>
    %52 = vector.multi_reduction <add>, %51, %cst_22 [1] : vector<512x128xf32> to vector<512xf32>
    %53 = vector.shape_cast %52 : vector<512xf32> to vector<512x1xf32>
    %54 = tpu.transpose %53, [1, 0] : vector<512x1xf32> -> vector<1x512xf32>
    %c0_23 = arith.constant 0 : index
    %55 = memref.load %arg7[%c0_23] : memref<1xf32, #tpu.memory_space<smem>>
    %56 = vector.broadcast %55 : f32 to vector<1x512xf32>
    %57 = arith.addf %54, %56 : vector<1x512xf32>
    %58 = arith.negf %57 : vector<1x512xf32>
    %59 = math.exp %58 : vector<1x512xf32>
    %cst_24 = arith.constant 1.000000e+00 : f32
    %60 = vector.broadcast %cst_24 : f32 to vector<1x512xf32>
    %61 = arith.addf %60, %59 : vector<1x512xf32>
    %62 = arith.divf %60, %61 : vector<1x512xf32>
    %c0_25 = arith.constant 0 : index
    %c0_26 = arith.constant 0 : index
    %c0_27 = arith.constant 0 : index
    %63 = vector.load %arg8[%c0_25, %c0_26, %c0_27] : memref<1x1x512xf32, #tpu.memory_space<vmem>>, vector<1x1x512xf32>
    %64 = vector.shape_cast %63 : vector<1x1x512xf32> to vector<1x512xf32>
    %65 = vector.shape_cast %62 : vector<1x512xf32> to vector<1x1x512xf32>
    tpu.vector_store %arg8[%c0_25, %c0_26, %c0_27], %65 {strides = array<i32>} : memref<1x1x512xf32, #tpu.memory_space<vmem>>, vector<1x1x512xf32>,
    return
  }
  func.func @transform_0(%arg0: i32) -> (i32, i32) {
    %c0_i32 = arith.constant 0 : i32
    %c0_i32_0 = arith.constant 0 : i32
    return %arg0, %c0_i32 : i32, i32
  }
  func.func @transform_1(%arg0: i32) -> (i32, i32) {
    %c0_i32 = arith.constant 0 : i32
    %c0_i32_0 = arith.constant 0 : i32
    %c0_i32_1 = arith.constant 0 : i32
    return %c0_i32, %c0_i32_0 : i32, i32
  }
  func.func @transform_2(%arg0: i32) -> (i32, i32) {
    %c0_i32 = arith.constant 0 : i32
    %c0_i32_0 = arith.constant 0 : i32
    %c0_i32_1 = arith.constant 0 : i32
    return %c0_i32, %c0_i32_0 : i32, i32
  }
  func.func @transform_3(%arg0: i32) -> (i32, i32, i32) {
    %c0_i32 = arith.constant 0 : i32
    %c0_i32_0 = arith.constant 0 : i32
    %c0_i32_1 = arith.constant 0 : i32
    %c0_i32_2 = arith.constant 0 : i32
    return %c0_i32, %c0_i32_0, %c0_i32_1 : i32, i32, i32
  }
  func.func @transform_4(%arg0: i32) -> (i32, i32, i32) {
    %c0_i32 = arith.constant 0 : i32
    %c0_i32_0 = arith.constant 0 : i32
    %c0_i32_1 = arith.constant 0 : i32
    %c0_i32_2 = arith.constant 0 : i32
    return %c0_i32, %c0_i32_0, %c0_i32_1 : i32, i32, i32
  }
  func.func @transform_5(%arg0: i32) -> (i32, i32) {
    %c0_i32 = arith.constant 0 : i32
    %c0_i32_0 = arith.constant 0 : i32
    %c0_i32_1 = arith.constant 0 : i32
    return %c0_i32, %c0_i32_0 : i32, i32
  }
  func.func @transform_6(%arg0: i32) -> i32 {
    %c0_i32 = arith.constant 0 : i32
    %c0_i32_0 = arith.constant 0 : i32
    return %c0_i32 : i32
  }
  func.func @transform_7(%arg0: i32) -> (i32, i32, i32) {
    %c0_i32 = arith.constant 0 : i32
    %c0_i32_0 = arith.constant 0 : i32
    %c0_i32_1 = arith.constant 0 : i32
    return %arg0, %c0_i32, %c0_i32_0 : i32, i32, i32
  }
}

</mosaic_0001>

<llo_original>
// kernel: tpu_custom_call.1
$region0: #{tpu_custom_call.1}
  #allocation0 [shape = 'u32[]', space=smem, size = 0x4, offset = 0x4, fixed_abs, tag = 'smem constant byte address 0x4 - core index']
  #allocation1 [shape = 'u32[72,128]{1,0:T(1,128)}', space=vmem, size = 0x9000, scoped, tag = 'internal scratch']
  #allocation2 [shape = 'f32[1]{0:T(128)S(6)}', space=smem, size = 0x200, scoped, tag = 'scoped memory for tpu_custom_call.1']
  %s0 = inlined_call_operand.vmem [shape: f32[512,2], index: 0, kind: input, shape index: {}]
  %s1 = inlined_call_operand.vmem [shape: f32[2,128], index: 1, kind: input, shape index: {}]
  %s2 = inlined_call_operand.vmem [shape: f32[1,128], index: 2, kind: input, shape index: {}]
  %s3 = inlined_call_operand.vmem [shape: bf16[3,128,128], index: 3, kind: input, shape index: {}]
  %s4 = inlined_call_operand.vmem [shape: f32[3,1,128], index: 4, kind: input, shape index: {}]
  %s5 = inlined_call_operand.vmem [shape: f32[1,128], index: 5, kind: input, shape index: {}]
  %s6 = inlined_call_operand.<no memory space> [shape: f32[1], index: 6, kind: input, shape index: {}]
  %s7 = inlined_call_operand.hbm [shape: f32[1,1,512], index: 7, kind: output, shape index: {}]
  %s8 = sld [smem:[#allocation0]]
  $region38: #{tpu_custom_call.1} parent=0
    _
  %s10 = ssub.s32 1, %s8
  %s11 = scalar_select 0, %s10, %s8
  %12 = sst [smem:[#allocation2]] %s6
  $region1: #{tpu_custom_call.1} parent=0
    #allocation3 [shape = 'u8[2048]{0}', space=vmem, size = 0x800, scoped, tag = 'output window, operand 0, single buffered']
    #allocation4 [shape = 's32[1]{0}', space=sflag, size = 0x4, scoped, tag = 'scoped memory for tpu_custom_call.1']
    %13 = vsyncpa [#allocation4], 0
    // Predicated region
    $region2: #{tpu_custom_call.1} parent=1 // pred_check
      _
    $region3: #{tpu_custom_call.1} parent=1 // pred_check_branch
      %15 = sbr.rel (0) target = $region5
    $region4: #{tpu_custom_call.1} parent=1 // pred_region
      _
    $region5: #{tpu_custom_call.1} parent=1 // pred_fallthru
      _
    // Predicated region
    $region6: #{tpu_custom_call.1} parent=1 // pred_check
      _
    $region7: #{tpu_custom_call.1} parent=1 // pred_check_branch
      %17 = sbr.rel (0) target = $region9
    $region8: #{tpu_custom_call.1} parent=1 // pred_region
      _
    $region9: #{tpu_custom_call.1} parent=1 // pred_fallthru
      _
    // Predicated region
    $region10: #{tpu_custom_call.1} parent=1 // pred_check
      _
    $region11: #{tpu_custom_call.1} parent=1 // pred_check_branch
      %19 = sbr.rel (0) target = $region13
    $region12: #{tpu_custom_call.1} parent=1 // pred_region
      _
    $region13: #{tpu_custom_call.1} parent=1 // pred_fallthru
      _
    // Predicated region
    $region14: #{tpu_custom_call.1} parent=1 // pred_check
      _
    $region15: #{tpu_custom_call.1} parent=1 // pred_check_branch
      %21 = sbr.rel (0) target = $region17
    $region16: #{tpu_custom_call.1} parent=1 // pred_region
      _
    $region17: #{tpu_custom_call.1} parent=1 // pred_fallthru
      _
    // Predicated region
    $region18: #{tpu_custom_call.1} parent=1 // pred_check
      _
    $region19: #{tpu_custom_call.1} parent=1 // pred_check_branch
      %23 = sbr.rel (0) target = $region21
    $region20: #{tpu_custom_call.1} parent=1 // pred_region
      _
    $region21: #{tpu_custom_call.1} parent=1 // pred_fallthru
      _
    // Predicated region
    $region22: #{tpu_custom_call.1} parent=1 // pred_check
      _
    $region23: #{tpu_custom_call.1} parent=1 // pred_check_branch
      %25 = sbr.rel (0) target = $region25
    $region24: #{tpu_custom_call.1} parent=1 // pred_region
      _
    $region25: #{tpu_custom_call.1} parent=1 // pred_fallthru
      _
    // Predicated region
    $region26: #{tpu_custom_call.1} parent=1 // pred_check
      _
    $region27: #{tpu_custom_call.1} parent=1 // pred_check_branch
      %27 = sbr.rel (0) target = $region29
    $region28: #{tpu_custom_call.1} parent=1 // pred_region
      _
    $region29: #{tpu_custom_call.1} parent=1 // pred_fallthru
      _
    %v28 = vld [vmem:[%s0] sm:$0xff]
    %v29 = vld [vmem:[%s0 + $0x8] sm:$0xff]
    %v30 = vld [vmem:[%s0 + $0x10] sm:$0xff]
    %v31 = vld [vmem:[%s0 + $0x18] sm:$0xff]
    %v32 = vld [vmem:[%s0 + $0x20] sm:$0xff]
    %v33 = vld [vmem:[%s0 + $0x28] sm:$0xff]
    %v34 = vld [vmem:[%s0 + $0x30] sm:$0xff]
    %v35 = vld [vmem:[%s0 + $0x38] sm:$0xff]
    %v36 = vld [vmem:[%s0 + $0x40] sm:$0xff]
    %v37 = vld [vmem:[%s0 + $0x48] sm:$0xff]
    %v38 = vld [vmem:[%s0 + $0x50] sm:$0xff]
    %v39 = vld [vmem:[%s0 + $0x58] sm:$0xff]
    %v40 = vld [vmem:[%s0 + $0x60] sm:$0xff]
    %v41 = vld [vmem:[%s0 + $0x68] sm:$0xff]
    %v42 = vld [vmem:[%s0 + $0x70] sm:$0xff]
    %v43 = vld [vmem:[%s0 + $0x78] sm:$0xff]
    %v44 = vld [vmem:[%s0 + $0x80] sm:$0xff]
    %v45 = vld [vmem:[%s0 + $0x88] sm:$0xff]
    %v46 = vld [vmem:[%s0 + $0x90] sm:$0xff]
    %v47 = vld [vmem:[%s0 + $0x98] sm:$0xff]
    %v48 = vld [vmem:[%s0 + $0xa0] sm:$0xff]
    %v49 = vld [vmem:[%s0 + $0xa8] sm:$0xff]
    %v50 = vld [vmem:[%s0 + $0xb0] sm:$0xff]
    %v51 = vld [vmem:[%s0 + $0xb8] sm:$0xff]
    %v52 = vld [vmem:[%s0 + $0xc0] sm:$0xff]
    %v53 = vld [vmem:[%s0 + $0xc8] sm:$0xff]
    %v54 = vld [vmem:[%s0 + $0xd0] sm:$0xff]
    %v55 = vld [vmem:[%s0 + $0xd8] sm:$0xff]
    %v56 = vld [vmem:[%s0 + $0xe0] sm:$0xff]
    %v57 = vld [vmem:[%s0 + $0xe8] sm:$0xff]
    %v58 = vld [vmem:[%s0 + $0xf0] sm:$0xff]
    %v59 = vld [vmem:[%s0 + $0xf8] sm:$0xff]
    %v60 = vld [vmem:[%s0 + $0x100] sm:$0xff]
    %v61 = vld [vmem:[%s0 + $0x108] sm:$0xff]
    %v62 = vld [vmem:[%s0 + $0x110] sm:$0xff]
    %v63 = vld [vmem:[%s0 + $0x118] sm:$0xff]
    %v64 = vld [vmem:[%s0 + $0x120] sm:$0xff]
    %v65 = vld [vmem:[%s0 + $0x128] sm:$0xff]
    %v66 = vld [vmem:[%s0 + $0x130] sm:$0xff]
    %v67 = vld [vmem:[%s0 + $0x138] sm:$0xff]
    %v68 = vld [vmem:[%s0 + $0x140] sm:$0xff]
    %v69 = vld [vmem:[%s0 + $0x148] sm:$0xff]
    %v70 = vld [vmem:[%s0 + $0x150] sm:$0xff]
    %v71 = vld [vmem:[%s0 + $0x158] sm:$0xff]
    %v72 = vld [vmem:[%s0 + $0x160] sm:$0xff]
    %v73 = vld [vmem:[%s0 + $0x168] sm:$0xff]
    %v74 = vld [vmem:[%s0 + $0x170] sm:$0xff]
    %v75 = vld [vmem:[%s0 + $0x178] sm:$0xff]
    %v76 = vld [vmem:[%s0 + $0x180] sm:$0xff]
    %v77 = vld [vmem:[%s0 + $0x188] sm:$0xff]
    %v78 = vld [vmem:[%s0 + $0x190] sm:$0xff]
    %v79 = vld [vmem:[%s0 + $0x198] sm:$0xff]
    %v80 = vld [vmem:[%s0 + $0x1a0] sm:$0xff]
    %v81 = vld [vmem:[%s0 + $0x1a8] sm:$0xff]
    %v82 = vld [vmem:[%s0 + $0x1b0] sm:$0xff]
    %v83 = vld [vmem:[%s0 + $0x1b8] sm:$0xff]
    %v84 = vld [vmem:[%s0 + $0x1c0] sm:$0xff]
    %v85 = vld [vmem:[%s0 + $0x1c8] sm:$0xff]
    %v86 = vld [vmem:[%s0 + $0x1d0] sm:$0xff]
    %v87 = vld [vmem:[%s0 + $0x1d8] sm:$0xff]
    %v88 = vld [vmem:[%s0 + $0x1e0] sm:$0xff]
    %v89 = vld [vmem:[%s0 + $0x1e8] sm:$0xff]
    %v90 = vld [vmem:[%s0 + $0x1f0] sm:$0xff]
    %v91 = vld [vmem:[%s0 + $0x1f8] sm:$0xff]
    %v92 = vld [vmem:[%s1] sm:$0x1]
    %94 = vset.pattern.permute.xlu0 0
    %95 = vperm.xlu0 %94, %v28
    %v96 = vpop.permute.xlu0 %95
    %99 = vset.pattern.permute.xlu0 0
    %100 = vperm.xlu0 %99, %v29
    %v101 = vpop.permute.xlu0 %100
    %104 = vset.pattern.permute.xlu0 0
    %105 = vperm.xlu0 %104, %v30
    %v106 = vpop.permute.xlu0 %105
    %109 = vset.pattern.permute.xlu0 0
    %110 = vperm.xlu0 %109, %v31
    %v111 = vpop.permute.xlu0 %110
    %114 = vset.pattern.permute.xlu0 0
    %115 = vperm.xlu0 %114, %v32
    %v116 = vpop.permute.xlu0 %115
    %119 = vset.pattern.permute.xlu0 0
    %120 = vperm.xlu0 %119, %v33
    %v121 = vpop.permute.xlu0 %120
    %124 = vset.pattern.permute.xlu0 0
    %125 = vperm.xlu0 %124, %v34
    %v126 = vpop.permute.xlu0 %125
    %129 = vset.pattern.permute.xlu0 0
    %130 = vperm.xlu0 %129, %v35
    %v131 = vpop.permute.xlu0 %130
    %134 = vset.pattern.permute.xlu0 0
    %135 = vperm.xlu0 %134, %v36
    %v136 = vpop.permute.xlu0 %135
    %139 = vset.pattern.permute.xlu0 0
    %140 = vperm.xlu0 %139, %v37
    %v141 = vpop.permute.xlu0 %140
    %144 = vset.pattern.permute.xlu0 0
    %145 = vperm.xlu0 %144, %v38
    %v146 = vpop.permute.xlu0 %145
    %149 = vset.pattern.permute.xlu0 0
    %150 = vperm.xlu0 %149, %v39
    %v151 = vpop.permute.xlu0 %150
    %154 = vset.pattern.permute.xlu0 0
    %155 = vperm.xlu0 %154, %v40
    %v156 = vpop.permute.xlu0 %155
    %159 = vset.pattern.permute.xlu0 0
    %160 = vperm.xlu0 %159, %v41
    %v161 = vpop.permute.xlu0 %160
    %164 = vset.pattern.permute.xlu0 0
    %165 = vperm.xlu0 %164, %v42
    %v166 = vpop.permute.xlu0 %165
    %169 = vset.pattern.permute.xlu0 0
    %170 = vperm.xlu0 %169, %v43
    %v171 = vpop.permute.xlu0 %170
    %174 = vset.pattern.permute.xlu0 0
    %175 = vperm.xlu0 %174, %v44
    %v176 = vpop.permute.xlu0 %175
    %179 = vset.pattern.permute.xlu0 0
    %180 = vperm.xlu0 %179, %v45
    %v181 = vpop.permute.xlu0 %180
    %184 = vset.pattern.permute.xlu0 0
    %185 = vperm.xlu0 %184, %v46
    %v186 = vpop.permute.xlu0 %185
    %189 = vset.pattern.permute.xlu0 0
    %190 = vperm.xlu0 %189, %v47
    %v191 = vpop.permute.xlu0 %190
    %194 = vset.pattern.permute.xlu0 0
    %195 = vperm.xlu0 %194, %v48
    %v196 = vpop.permute.xlu0 %195
    %199 = vset.pattern.permute.xlu0 0
    %200 = vperm.xlu0 %199, %v49
    %v201 = vpop.permute.xlu0 %200
    %204 = vset.pattern.permute.xlu0 0
    %205 = vperm.xlu0 %204, %v50
    %v206 = vpop.permute.xlu0 %205
    %209 = vset.pattern.permute.xlu0 0
    %210 = vperm.xlu0 %209, %v51
    %v211 = vpop.permute.xlu0 %210
    %214 = vset.pattern.permute.xlu0 0
    %215 = vperm.xlu0 %214, %v52
    %v216 = vpop.permute.xlu0 %215
    %219 = vset.pattern.permute.xlu0 0
    %220 = vperm.xlu0 %219, %v53
    %v221 = vpop.permute.xlu0 %220
    %224 = vset.pattern.permute.xlu0 0
    %225 = vperm.xlu0 %224, %v54
    %v226 = vpop.permute.xlu0 %225
    %229 = vset.pattern.permute.xlu0 0
    %230 = vperm.xlu0 %229, %v55
    %v231 = vpop.permute.xlu0 %230
    %234 = vset.pattern.permute.xlu0 0
    %235 = vperm.xlu0 %234, %v56
    %v236 = vpop.permute.xlu0 %235
    %239 = vset.pattern.permute.xlu0 0
    %240 = vperm.xlu0 %239, %v57
    %v241 = vpop.permute.xlu0 %240
    %244 = vset.pattern.permute.xlu0 0
    %245 = vperm.xlu0 %244, %v58
    %v246 = vpop.permute.xlu0 %245
    %249 = vset.pattern.permute.xlu0 0
    %250 = vperm.xlu0 %249, %v59
    %v251 = vpop.permute.xlu0 %250
    %254 = vset.pattern.permute.xlu0 0
    %255 = vperm.xlu0 %254, %v60
    %v256 = vpop.permute.xlu0 %255
    %259 = vset.pattern.permute.xlu0 0
    %260 = vperm.xlu0 %259, %v61
    %v261 = vpop.permute.xlu0 %260
    %264 = vset.pattern.permute.xlu0 0
    %265 = vperm.xlu0 %264, %v62
    %v266 = vpop.permute.xlu0 %265
    %269 = vset.pattern.permute.xlu0 0
    %270 = vperm.xlu0 %269, %v63
    %v271 = vpop.permute.xlu0 %270
    %274 = vset.pattern.permute.xlu0 0
    %275 = vperm.xlu0 %274, %v64
    %v276 = vpop.permute.xlu0 %275
    %279 = vset.pattern.permute.xlu0 0
    %280 = vperm.xlu0 %279, %v65
    %v281 = vpop.permute.xlu0 %280
    %284 = vset.pattern.permute.xlu0 0
    %285 = vperm.xlu0 %284, %v66
    %v286 = vpop.permute.xlu0 %285
    %289 = vset.pattern.permute.xlu0 0
    %290 = vperm.xlu0 %289, %v67
    %v291 = vpop.permute.xlu0 %290
    %294 = vset.pattern.permute.xlu0 0
    %295 = vperm.xlu0 %294, %v68
    %v296 = vpop.permute.xlu0 %295
    %299 = vset.pattern.permute.xlu0 0
    %300 = vperm.xlu0 %299, %v69
    %v301 = vpop.permute.xlu0 %300
    %304 = vset.pattern.permute.xlu0 0
    %305 = vperm.xlu0 %304, %v70
    %v306 = vpop.permute.xlu0 %305
    %309 = vset.pattern.permute.xlu0 0
    %310 = vperm.xlu0 %309, %v71
    %v311 = vpop.permute.xlu0 %310
    %314 = vset.pattern.permute.xlu0 0
    %315 = vperm.xlu0 %314, %v72
    %v316 = vpop.permute.xlu0 %315
    %319 = vset.pattern.permute.xlu0 0
    %320 = vperm.xlu0 %319, %v73
    %v321 = vpop.permute.xlu0 %320
    %324 = vset.pattern.permute.xlu0 0
    %325 = vperm.xlu0 %324, %v74
    %v326 = vpop.permute.xlu0 %325
    %329 = vset.pattern.permute.xlu0 0
    %330 = vperm.xlu0 %329, %v75
    %v331 = vpop.permute.xlu0 %330
    %334 = vset.pattern.permute.xlu0 0
    %335 = vperm.xlu0 %334, %v76
    %v336 = vpop.permute.xlu0 %335
    %339 = vset.pattern.permute.xlu0 0
    %340 = vperm.xlu0 %339, %v77
    %v341 = vpop.permute.xlu0 %340
    %344 = vset.pattern.permute.xlu0 0
    %345 = vperm.xlu0 %344, %v78
    %v346 = vpop.permute.xlu0 %345
    %349 = vset.pattern.permute.xlu0 0
    %350 = vperm.xlu0 %349, %v79
    %v351 = vpop.permute.xlu0 %350
    %354 = vset.pattern.permute.xlu0 0
    %355 = vperm.xlu0 %354, %v80
    %v356 = vpop.permute.xlu0 %355
    %359 = vset.pattern.permute.xlu0 0
    %360 = vperm.xlu0 %359, %v81
    %v361 = vpop.permute.xlu0 %360
    %364 = vset.pattern.permute.xlu0 0
    %365 = vperm.xlu0 %364, %v82
    %v366 = vpop.permute.xlu0 %365
    %369 = vset.pattern.permute.xlu0 0
    %370 = vperm.xlu0 %369, %v83
    %v371 = vpop.permute.xlu0 %370
    %374 = vset.pattern.permute.xlu0 0
    %375 = vperm.xlu0 %374, %v84
    %v376 = vpop.permute.xlu0 %375
    %379 = vset.pattern.permute.xlu0 0
    %380 = vperm.xlu0 %379, %v85
    %v381 = vpop.permute.xlu0 %380
    %384 = vset.pattern.permute.xlu0 0
    %385 = vperm.xlu0 %384, %v86
    %v386 = vpop.permute.xlu0 %385
    %389 = vset.pattern.permute.xlu0 0
    %390 = vperm.xlu0 %389, %v87
    %v391 = vpop.permute.xlu0 %390
    %394 = vset.pattern.permute.xlu0 0
    %395 = vperm.xlu0 %394, %v88
    %v396 = vpop.permute.xlu0 %395
    %399 = vset.pattern.permute.xlu0 0
    %400 = vperm.xlu0 %399, %v89
    %v401 = vpop.permute.xlu0 %400
    %404 = vset.pattern.permute.xlu0 0
    %405 = vperm.xlu0 %404, %v90
    %v406 = vpop.permute.xlu0 %405
    %409 = vset.pattern.permute.xlu0 0
    %410 = vperm.xlu0 %409, %v91
    %v411 = vpop.permute.xlu0 %410
    %v413 = vperm.slane %v92, 0
    %v414 = vmul.f32 %v96, %v413
    %v415 = vmul.f32 %v101, %v413
    %v416 = vmul.f32 %v106, %v413
    %v417 = vmul.f32 %v111, %v413
    %v418 = vmul.f32 %v116, %v413
    %v419 = vmul.f32 %v121, %v413
    %v420 = vmul.f32 %v126, %v413
    %v421 = vmul.f32 %v131, %v413
    %v422 = vmul.f32 %v136, %v413
    %v423 = vmul.f32 %v141, %v413
    %v424 = vmul.f32 %v146, %v413
    %v425 = vmul.f32 %v151, %v413
    %v426 = vmul.f32 %v156, %v413
    %v427 = vmul.f32 %v161, %v413
    %v428 = vmul.f32 %v166, %v413
    %v429 = vmul.f32 %v171, %v413
    %v430 = vmul.f32 %v176, %v413
    %v431 = vmul.f32 %v181, %v413
    %v432 = vmul.f32 %v186, %v413
    %v433 = vmul.f32 %v191, %v413
    %v434 = vmul.f32 %v196, %v413
    %v435 = vmul.f32 %v201, %v413
    %v436 = vmul.f32 %v206, %v413
    %v437 = vmul.f32 %v211, %v413
    %v438 = vmul.f32 %v216, %v413
    %v439 = vmul.f32 %v221, %v413
    %v440 = vmul.f32 %v226, %v413
    %v441 = vmul.f32 %v231, %v413
    %v442 = vmul.f32 %v236, %v413
    %v443 = vmul.f32 %v241, %v413
    %v444 = vmul.f32 %v246, %v413
    %v445 = vmul.f32 %v251, %v413
    %v446 = vmul.f32 %v256, %v413
    %v447 = vmul.f32 %v261, %v413
    %v448 = vmul.f32 %v266, %v413
    %v449 = vmul.f32 %v271, %v413
    %v450 = vmul.f32 %v276, %v413
    %v451 = vmul.f32 %v281, %v413
    %v452 = vmul.f32 %v286, %v413
    %v453 = vmul.f32 %v291, %v413
    %v454 = vmul.f32 %v296, %v413
    %v455 = vmul.f32 %v301, %v413
    %v456 = vmul.f32 %v306, %v413
    %v457 = vmul.f32 %v311, %v413
    %v458 = vmul.f32 %v316, %v413
    %v459 = vmul.f32 %v321, %v413
    %v460 = vmul.f32 %v326, %v413
    %v461 = vmul.f32 %v331, %v413
    %v462 = vmul.f32 %v336, %v413
    %v463 = vmul.f32 %v341, %v413
    %v464 = vmul.f32 %v346, %v413
    %v465 = vmul.f32 %v351, %v413
    %v466 = vmul.f32 %v356, %v413
    %v467 = vmul.f32 %v361, %v413
    %v468 = vmul.f32 %v366, %v413
    %v469 = vmul.f32 %v371, %v413
    %v470 = vmul.f32 %v376, %v413
    %v471 = vmul.f32 %v381, %v413
    %v472 = vmul.f32 %v386, %v413
    %v473 = vmul.f32 %v391, %v413
    %v474 = vmul.f32 %v396, %v413
    %v475 = vmul.f32 %v401, %v413
    %v476 = vmul.f32 %v406, %v413
    %v477 = vmul.f32 %v411, %v413
    %v478 = vld [vmem:[%s1 + $0x1] sm:$0x1]
    %479 = vset.pattern.permute.xlu0 1
    %480 = vperm.xlu0 %479, %v28
    %v481 = vpop.permute.xlu0 %480
    %483 = vset.pattern.permute.xlu0 1
    %484 = vperm.xlu0 %483, %v29
    %v485 = vpop.permute.xlu0 %484
    %487 = vset.pattern.permute.xlu0 1
    %488 = vperm.xlu0 %487, %v30
    %v489 = vpop.permute.xlu0 %488
    %491 = vset.pattern.permute.xlu0 1
    %492 = vperm.xlu0 %491, %v31
    %v493 = vpop.permute.xlu0 %492
    %495 = vset.pattern.permute.xlu0 1
    %496 = vperm.xlu0 %495, %v32
    %v497 = vpop.permute.xlu0 %496
    %499 = vset.pattern.permute.xlu0 1
    %500 = vperm.xlu0 %499, %v33
    %v501 = vpop.permute.xlu0 %500
    %503 = vset.pattern.permute.xlu0 1
    %504 = vperm.xlu0 %503, %v34
    %v505 = vpop.permute.xlu0 %504
    %507 = vset.pattern.permute.xlu0 1
    %508 = vperm.xlu0 %507, %v35
    %v509 = vpop.permute.xlu0 %508
    %511 = vset.pattern.permute.xlu0 1
    %512 = vperm.xlu0 %511, %v36
    %v513 = vpop.permute.xlu0 %512
    %515 = vset.pattern.permute.xlu0 1
    %516 = vperm.xlu0 %515, %v37
    %v517 = vpop.permute.xlu0 %516
    %519 = vset.pattern.permute.xlu0 1
    %520 = vperm.xlu0 %519, %v38
    %v521 = vpop.permute.xlu0 %520
    %523 = vset.pattern.permute.xlu0 1
    %524 = vperm.xlu0 %523, %v39
    %v525 = vpop.permute.xlu0 %524
    %527 = vset.pattern.permute.xlu0 1
    %528 = vperm.xlu0 %527, %v40
    %v529 = vpop.permute.xlu0 %528
    %531 = vset.pattern.permute.xlu0 1
    %532 = vperm.xlu0 %531, %v41
    %v533 = vpop.permute.xlu0 %532
    %535 = vset.pattern.permute.xlu0 1
    %536 = vperm.xlu0 %535, %v42
    %v537 = vpop.permute.xlu0 %536
    %539 = vset.pattern.permute.xlu0 1
    %540 = vperm.xlu0 %539, %v43
    %v541 = vpop.permute.xlu0 %540
    %543 = vset.pattern.permute.xlu0 1
    %544 = vperm.xlu0 %543, %v44
    %v545 = vpop.permute.xlu0 %544
    %547 = vset.pattern.permute.xlu0 1
    %548 = vperm.xlu0 %547, %v45
    %v549 = vpop.permute.xlu0 %548
    %551 = vset.pattern.permute.xlu0 1
    %552 = vperm.xlu0 %551, %v46
    %v553 = vpop.permute.xlu0 %552
    %555 = vset.pattern.permute.xlu0 1
    %556 = vperm.xlu0 %555, %v47
    %v557 = vpop.permute.xlu0 %556
    %559 = vset.pattern.permute.xlu0 1
    %560 = vperm.xlu0 %559, %v48
    %v561 = vpop.permute.xlu0 %560
    %563 = vset.pattern.permute.xlu0 1
    %564 = vperm.xlu0 %563, %v49
    %v565 = vpop.permute.xlu0 %564
    %567 = vset.pattern.permute.xlu0 1
    %568 = vperm.xlu0 %567, %v50
    %v569 = vpop.permute.xlu0 %568
    %571 = vset.pattern.permute.xlu0 1
    %572 = vperm.xlu0 %571, %v51
    %v573 = vpop.permute.xlu0 %572
    %575 = vset.pattern.permute.xlu0 1
    %576 = vperm.xlu0 %575, %v52
    %v577 = vpop.permute.xlu0 %576
    %579 = vset.pattern.permute.xlu0 1
    %580 = vperm.xlu0 %579, %v53
    %v581 = vpop.permute.xlu0 %580
    %583 = vset.pattern.permute.xlu0 1
    %584 = vperm.xlu0 %583, %v54
    %v585 = vpop.permute.xlu0 %584
    %587 = vset.pattern.permute.xlu0 1
    %588 = vperm.xlu0 %587, %v55
    %v589 = vpop.permute.xlu0 %588
    %591 = vset.pattern.permute.xlu0 1
    %592 = vperm.xlu0 %591, %v56
    %v593 = vpop.permute.xlu0 %592
    %595 = vset.pattern.permute.xlu0 1
    %596 = vperm.xlu0 %595, %v57
    %v597 = vpop.permute.xlu0 %596
    %599 = vset.pattern.permute.xlu0 1
    %600 = vperm.xlu0 %599, %v58
    %v601 = vpop.permute.xlu0 %600
    %603 = vset.pattern.permute.xlu0 1
    %604 = vperm.xlu0 %603, %v59
    %v605 = vpop.permute.xlu0 %604
    %607 = vset.pattern.permute.xlu0 1
    %608 = vperm.xlu0 %607, %v60
    %v609 = vpop.permute.xlu0 %608
    %611 = vset.pattern.permute.xlu0 1
    %612 = vperm.xlu0 %611, %v61
    %v613 = vpop.permute.xlu0 %612
    %615 = vset.pattern.permute.xlu0 1
    %616 = vperm.xlu0 %615, %v62
    %v617 = vpop.permute.xlu0 %616
    %619 = vset.pattern.permute.xlu0 1
    %620 = vperm.xlu0 %619, %v63
    %v621 = vpop.permute.xlu0 %620
    %623 = vset.pattern.permute.xlu0 1
    %624 = vperm.xlu0 %623, %v64
    %v625 = vpop.permute.xlu0 %624
    %627 = vset.pattern.permute.xlu0 1
    %628 = vperm.xlu0 %627, %v65
    %v629 = vpop.permute.xlu0 %628
    %631 = vset.pattern.permute.xlu0 1
    %632 = vperm.xlu0 %631, %v66
    %v633 = vpop.permute.xlu0 %632
    %635 = vset.pattern.permute.xlu0 1
    %636 = vperm.xlu0 %635, %v67
    %v637 = vpop.permute.xlu0 %636
    %639 = vset.pattern.permute.xlu0 1
    %640 = vperm.xlu0 %639, %v68
    %v641 = vpop.permute.xlu0 %640
    %643 = vset.pattern.permute.xlu0 1
    %644 = vperm.xlu0 %643, %v69
    %v645 = vpop.permute.xlu0 %644
    %647 = vset.pattern.permute.xlu0 1
    %648 = vperm.xlu0 %647, %v70
    %v649 = vpop.permute.xlu0 %648
    %651 = vset.pattern.permute.xlu0 1
    %652 = vperm.xlu0 %651, %v71
    %v653 = vpop.permute.xlu0 %652
    %655 = vset.pattern.permute.xlu0 1
    %656 = vperm.xlu0 %655, %v72
    %v657 = vpop.permute.xlu0 %656
    %659 = vset.pattern.permute.xlu0 1
    %660 = vperm.xlu0 %659, %v73
    %v661 = vpop.permute.xlu0 %660
    %663 = vset.pattern.permute.xlu0 1
    %664 = vperm.xlu0 %663, %v74
    %v665 = vpop.permute.xlu0 %664
    %667 = vset.pattern.permute.xlu0 1
    %668 = vperm.xlu0 %667, %v75
    %v669 = vpop.permute.xlu0 %668
    %671 = vset.pattern.permute.xlu0 1
    %672 = vperm.xlu0 %671, %v76
    %v673 = vpop.permute.xlu0 %672
    %675 = vset.pattern.permute.xlu0 1
    %676 = vperm.xlu0 %675, %v77
    %v677 = vpop.permute.xlu0 %676
    %679 = vset.pattern.permute.xlu0 1
    %680 = vperm.xlu0 %679, %v78
    %v681 = vpop.permute.xlu0 %680
    %683 = vset.pattern.permute.xlu0 1
    %684 = vperm.xlu0 %683, %v79
    %v685 = vpop.permute.xlu0 %684
    %687 = vset.pattern.permute.xlu0 1
    %688 = vperm.xlu0 %687, %v80
    %v689 = vpop.permute.xlu0 %688
    %691 = vset.pattern.permute.xlu0 1
    %692 = vperm.xlu0 %691, %v81
    %v693 = vpop.permute.xlu0 %692
    %695 = vset.pattern.permute.xlu0 1
    %696 = vperm.xlu0 %695, %v82
    %v697 = vpop.permute.xlu0 %696
    %699 = vset.pattern.permute.xlu0 1
    %700 = vperm.xlu0 %699, %v83
    %v701 = vpop.permute.xlu0 %700
    %703 = vset.pattern.permute.xlu0 1
    %704 = vperm.xlu0 %703, %v84
    %v705 = vpop.permute.xlu0 %704
    %707 = vset.pattern.permute.xlu0 1
    %708 = vperm.xlu0 %707, %v85
    %v709 = vpop.permute.xlu0 %708
    %711 = vset.pattern.permute.xlu0 1
    %712 = vperm.xlu0 %711, %v86
    %v713 = vpop.permute.xlu0 %712
    %715 = vset.pattern.permute.xlu0 1
    %716 = vperm.xlu0 %715, %v87
    %v717 = vpop.permute.xlu0 %716
    %719 = vset.pattern.permute.xlu0 1
    %720 = vperm.xlu0 %719, %v88
    %v721 = vpop.permute.xlu0 %720
    %723 = vset.pattern.permute.xlu0 1
    %724 = vperm.xlu0 %723, %v89
    %v725 = vpop.permute.xlu0 %724
    %727 = vset.pattern.permute.xlu0 1
    %728 = vperm.xlu0 %727, %v90
    %v729 = vpop.permute.xlu0 %728
    %731 = vset.pattern.permute.xlu0 1
    %732 = vperm.xlu0 %731, %v91
    %v733 = vpop.permute.xlu0 %732
    %v735 = vperm.slane %v478, 0
    %v736 = vmul.f32 %v481, %v735
    %v737 = vmul.f32 %v485, %v735
    %v738 = vmul.f32 %v489, %v735
    %v739 = vmul.f32 %v493, %v735
    %v740 = vmul.f32 %v497, %v735
    %v741 = vmul.f32 %v501, %v735
    %v742 = vmul.f32 %v505, %v735
    %v743 = vmul.f32 %v509, %v735
    %v744 = vmul.f32 %v513, %v735
    %v745 = vmul.f32 %v517, %v735
    %v746 = vmul.f32 %v521, %v735
    %v747 = vmul.f32 %v525, %v735
    %v748 = vmul.f32 %v529, %v735
    %v749 = vmul.f32 %v533, %v735
    %v750 = vmul.f32 %v537, %v735
    %v751 = vmul.f32 %v541, %v735
    %v752 = vmul.f32 %v545, %v735
    %v753 = vmul.f32 %v549, %v735
    %v754 = vmul.f32 %v553, %v735
    %v755 = vmul.f32 %v557, %v735
    %v756 = vmul.f32 %v561, %v735
    %v757 = vmul.f32 %v565, %v735
    %v758 = vmul.f32 %v569, %v735
    %v759 = vmul.f32 %v573, %v735
    %v760 = vmul.f32 %v577, %v735
    %v761 = vmul.f32 %v581, %v735
    %v762 = vmul.f32 %v585, %v735
    %v763 = vmul.f32 %v589, %v735
    %v764 = vmul.f32 %v593, %v735
    %v765 = vmul.f32 %v597, %v735
    %v766 = vmul.f32 %v601, %v735
    %v767 = vmul.f32 %v605, %v735
    %v768 = vmul.f32 %v609, %v735
    %v769 = vmul.f32 %v613, %v735
    %v770 = vmul.f32 %v617, %v735
    %v771 = vmul.f32 %v621, %v735
    %v772 = vmul.f32 %v625, %v735
    %v773 = vmul.f32 %v629, %v735
    %v774 = vmul.f32 %v633, %v735
    %v775 = vmul.f32 %v637, %v735
    %v776 = vmul.f32 %v641, %v735
    %v777 = vmul.f32 %v645, %v735
    %v778 = vmul.f32 %v649, %v735
    %v779 = vmul.f32 %v653, %v735
    %v780 = vmul.f32 %v657, %v735
    %v781 = vmul.f32 %v661, %v735
    %v782 = vmul.f32 %v665, %v735
    %v783 = vmul.f32 %v669, %v735
    %v784 = vmul.f32 %v673, %v735
    %v785 = vmul.f32 %v677, %v735
    %v786 = vmul.f32 %v681, %v735
    %v787 = vmul.f32 %v685, %v735
    %v788 = vmul.f32 %v689, %v735
    %v789 = vmul.f32 %v693, %v735
    %v790 = vmul.f32 %v697, %v735
    %v791 = vmul.f32 %v701, %v735
    %v792 = vmul.f32 %v705, %v735
    %v793 = vmul.f32 %v709, %v735
    %v794 = vmul.f32 %v713, %v735
    %v795 = vmul.f32 %v717, %v735
    %v796 = vmul.f32 %v721, %v735
    %v797 = vmul.f32 %v725, %v735
    %v798 = vmul.f32 %v729, %v735
    %v799 = vmul.f32 %v733, %v735
    %v800 = vadd.f32 %v414, %v736
    %v801 = vadd.f32 %v415, %v737
    %v802 = vadd.f32 %v416, %v738
    %v803 = vadd.f32 %v417, %v739
    %v804 = vadd.f32 %v418, %v740
    %v805 = vadd.f32 %v419, %v741
    %v806 = vadd.f32 %v420, %v742
    %v807 = vadd.f32 %v421, %v743
    %v808 = vadd.f32 %v422, %v744
    %v809 = vadd.f32 %v423, %v745
    %v810 = vadd.f32 %v424, %v746
    %v811 = vadd.f32 %v425, %v747
    %v812 = vadd.f32 %v426, %v748
    %v813 = vadd.f32 %v427, %v749
    %v814 = vadd.f32 %v428, %v750
    %v815 = vadd.f32 %v429, %v751
    %v816 = vadd.f32 %v430, %v752
    %v817 = vadd.f32 %v431, %v753
    %v818 = vadd.f32 %v432, %v754
    %v819 = vadd.f32 %v433, %v755
    %v820 = vadd.f32 %v434, %v756
    %v821 = vadd.f32 %v435, %v757
    %v822 = vadd.f32 %v436, %v758
    %v823 = vadd.f32 %v437, %v759
    %v824 = vadd.f32 %v438, %v760
    %v825 = vadd.f32 %v439, %v761
    %v826 = vadd.f32 %v440, %v762
    %v827 = vadd.f32 %v441, %v763
    %v828 = vadd.f32 %v442, %v764
    %v829 = vadd.f32 %v443, %v765
    %v830 = vadd.f32 %v444, %v766
    %v831 = vadd.f32 %v445, %v767
    %v832 = vadd.f32 %v446, %v768
    %v833 = vadd.f32 %v447, %v769
    %v834 = vadd.f32 %v448, %v770
    %v835 = vadd.f32 %v449, %v771
    %v836 = vadd.f32 %v450, %v772
    %v837 = vadd.f32 %v451, %v773
    %v838 = vadd.f32 %v452, %v774
    %v839 = vadd.f32 %v453, %v775
    %v840 = vadd.f32 %v454, %v776
    %v841 = vadd.f32 %v455, %v777
    %v842 = vadd.f32 %v456, %v778
    %v843 = vadd.f32 %v457, %v779
    %v844 = vadd.f32 %v458, %v780
    %v845 = vadd.f32 %v459, %v781
    %v846 = vadd.f32 %v460, %v782
    %v847 = vadd.f32 %v461, %v783
    %v848 = vadd.f32 %v462, %v784
    %v849 = vadd.f32 %v463, %v785
    %v850 = vadd.f32 %v464, %v786
    %v851 = vadd.f32 %v465, %v787
    %v852 = vadd.f32 %v466, %v788
    %v853 = vadd.f32 %v467, %v789
    %v854 = vadd.f32 %v468, %v790
    %v855 = vadd.f32 %v469, %v791
    %v856 = vadd.f32 %v470, %v792
    %v857 = vadd.f32 %v471, %v793
    %v858 = vadd.f32 %v472, %v794
    %v859 = vadd.f32 %v473, %v795
    %v860 = vadd.f32 %v474, %v796
    %v861 = vadd.f32 %v475, %v797
    %v862 = vadd.f32 %v476, %v798
    %v863 = vadd.f32 %v477, %v799
    %v864 = vld [vmem:[%s2] sm:$0x1]
    %v866 = vperm.slane %v864, 0
    %v868 = vadd.f32 %v800, %v866
    %v869 = vadd.f32 %v801, %v866
    %v870 = vadd.f32 %v802, %v866
    %v871 = vadd.f32 %v803, %v866
    %v872 = vadd.f32 %v804, %v866
    %v873 = vadd.f32 %v805, %v866
    %v874 = vadd.f32 %v806, %v866
    %v875 = vadd.f32 %v807, %v866
    %v876 = vadd.f32 %v808, %v866
    %v877 = vadd.f32 %v809, %v866
    %v878 = vadd.f32 %v810, %v866
    %v879 = vadd.f32 %v811, %v866
    %v880 = vadd.f32 %v812, %v866
    %v881 = vadd.f32 %v813, %v866
    %v882 = vadd.f32 %v814, %v866
    %v883 = vadd.f32 %v815, %v866
    %v884 = vadd.f32 %v816, %v866
    %v885 = vadd.f32 %v817, %v866
    %v886 = vadd.f32 %v818, %v866
    %v887 = vadd.f32 %v819, %v866
    %v888 = vadd.f32 %v820, %v866
    %v889 = vadd.f32 %v821, %v866
    %v890 = vadd.f32 %v822, %v866
    %v891 = vadd.f32 %v823, %v866
    %v892 = vadd.f32 %v824, %v866
    %v893 = vadd.f32 %v825, %v866
    %v894 = vadd.f32 %v826, %v866
    %v895 = vadd.f32 %v827, %v866
    %v896 = vadd.f32 %v828, %v866
    %v897 = vadd.f32 %v829, %v866
    %v898 = vadd.f32 %v830, %v866
    %v899 = vadd.f32 %v831, %v866
    %v900 = vadd.f32 %v832, %v866
    %v901 = vadd.f32 %v833, %v866
    %v902 = vadd.f32 %v834, %v866
    %v903 = vadd.f32 %v835, %v866
    %v904 = vadd.f32 %v836, %v866
    %v905 = vadd.f32 %v837, %v866
    %v906 = vadd.f32 %v838, %v866
    %v907 = vadd.f32 %v839, %v866
    %v908 = vadd.f32 %v840, %v866
    %v909 = vadd.f32 %v841, %v866
    %v910 = vadd.f32 %v842, %v866
    %v911 = vadd.f32 %v843, %v866
    %v912 = vadd.f32 %v844, %v866
    %v913 = vadd.f32 %v845, %v866
    %v914 = vadd.f32 %v846, %v866
    %v915 = vadd.f32 %v847, %v866
    %v916 = vadd.f32 %v848, %v866
    %v917 = vadd.f32 %v849, %v866
    %v918 = vadd.f32 %v850, %v866
    %v919 = vadd.f32 %v851, %v866
    %v920 = vadd.f32 %v852, %v866
    %v921 = vadd.f32 %v853, %v866
    %v922 = vadd.f32 %v854, %v866
    %v923 = vadd.f32 %v855, %v866
    %v924 = vadd.f32 %v856, %v866
    %v925 = vadd.f32 %v857, %v866
    %v926 = vadd.f32 %v858, %v866
    %v927 = vadd.f32 %v859, %v866
    %v928 = vadd.f32 %v860, %v866
    %v929 = vadd.f32 %v861, %v866
    %v930 = vadd.f32 %v862, %v866
    %v931 = vadd.f32 %v863, %v866
    %v932 = vtanh.pop %v868
    %v933 = vtanh.pop %v869
    %v934 = vtanh.pop %v870
    %v935 = vtanh.pop %v871
    %v936 = vtanh.pop %v872
    %v937 = vtanh.pop %v873
    %v938 = vtanh.pop %v874
    %v939 = vtanh.pop %v875
    %v940 = vtanh.pop %v876
    %v941 = vtanh.pop %v877
    %v942 = vtanh.pop %v878
    %v943 = vtanh.pop %v879
    %v944 = vtanh.pop %v880
    %v945 = vtanh.pop %v881
    %v946 = vtanh.pop %v882
    %v947 = vtanh.pop %v883
    %v948 = vtanh.pop %v884
    %v949 = vtanh.pop %v885
    %v950 = vtanh.pop %v886
    %v951 = vtanh.pop %v887
    %v952 = vtanh.pop %v888
    %v953 = vtanh.pop %v889
    %v954 = vtanh.pop %v890
    %v955 = vtanh.pop %v891
    %v956 = vtanh.pop %v892
    %v957 = vtanh.pop %v893
    %v958 = vtanh.pop %v894
    %v959 = vtanh.pop %v895
    %v960 = vtanh.pop %v896
    %v961 = vtanh.pop %v897
    %v962 = vtanh.pop %v898
    %v963 = vtanh.pop %v899
    %v964 = vtanh.pop %v900
    %v965 = vtanh.pop %v901
    %v966 = vtanh.pop %v902
    %v967 = vtanh.pop %v903
    %v968 = vtanh.pop %v904
    %v969 = vtanh.pop %v905
    %v970 = vtanh.pop %v906
    %v971 = vtanh.pop %v907
    %v972 = vtanh.pop %v908
    %v973 = vtanh.pop %v909
    %v974 = vtanh.pop %v910
    %v975 = vtanh.pop %v911
    %v976 = vtanh.pop %v912
    %v977 = vtanh.pop %v913
    %v978 = vtanh.pop %v914
    %v979 = vtanh.pop %v915
    %v980 = vtanh.pop %v916
    %v981 = vtanh.pop %v917
    %v982 = vtanh.pop %v918
    %v983 = vtanh.pop %v919
    %v984 = vtanh.pop %v920
    %v985 = vtanh.pop %v921
    %v986 = vtanh.pop %v922
    %v987 = vtanh.pop %v923
    %v988 = vtanh.pop %v924
    %v989 = vtanh.pop %v925
    %v990 = vtanh.pop %v926
    %v991 = vtanh.pop %v927
    %v992 = vtanh.pop %v928
    %v993 = vtanh.pop %v929
    %v994 = vtanh.pop %v930
    %v995 = vtanh.pop %v931
    %v996 = vld [vmem:[%s3] sm:$0xf]
    %v997 = vld [vmem:[%s3 + $0x4] sm:$0xf]
    %v998 = vld [vmem:[%s3 + $0x8] sm:$0xf]
    %v999 = vld [vmem:[%s3 + $0xc] sm:$0xf]
    %v1000 = vld [vmem:[%s3 + $0x10] sm:$0xf]
    %v1001 = vld [vmem:[%s3 + $0x14] sm:$0xf]
    %v1002 = vld [vmem:[%s3 + $0x18] sm:$0xf]
    %v1003 = vld [vmem:[%s3 + $0x1c] sm:$0xf]
    %v1004 = vld [vmem:[%s3 + $0x20] sm:$0xf]
    %v1005 = vld [vmem:[%s3 + $0x24] sm:$0xf]
    %v1006 = vld [vmem:[%s3 + $0x28] sm:$0xf]
    %v1007 = vld [vmem:[%s3 + $0x2c] sm:$0xf]
    %v1008 = vld [vmem:[%s3 + $0x30] sm:$0xf]
    %v1009 = vld [vmem:[%s3 + $0x34] sm:$0xf]
    %v1010 = vld [vmem:[%s3 + $0x38] sm:$0xf]
    %v1011 = vld [vmem:[%s3 + $0x3c] sm:$0xf]
    %v1012 = vld [vmem:[%s4] sm:$0x1]
    %v1013 = vpack.c.bf16 %v933, %v932
    %v1014 = vpack.c.bf16 %v935, %v934
    %v1015 = vpack.c.bf16 %v937, %v936
    %v1016 = vpack.c.bf16 %v939, %v938
    %v1017 = vpack.c.bf16 %v941, %v940
    %v1018 = vpack.c.bf16 %v943, %v942
    %v1019 = vpack.c.bf16 %v945, %v944
    %v1020 = vpack.c.bf16 %v947, %v946
    %v1021 = vpack.c.bf16 %v949, %v948
    %v1022 = vpack.c.bf16 %v951, %v950
    %v1023 = vpack.c.bf16 %v953, %v952
    %v1024 = vpack.c.bf16 %v955, %v954
    %v1025 = vpack.c.bf16 %v957, %v956
    %v1026 = vpack.c.bf16 %v959, %v958
    %v1027 = vpack.c.bf16 %v961, %v960
    %v1028 = vpack.c.bf16 %v963, %v962
    %v1029 = vpack.c.bf16 %v965, %v964
    %v1030 = vpack.c.bf16 %v967, %v966
    %v1031 = vpack.c.bf16 %v969, %v968
    %v1032 = vpack.c.bf16 %v971, %v970
    %v1033 = vpack.c.bf16 %v973, %v972
    %v1034 = vpack.c.bf16 %v975, %v974
    %v1035 = vpack.c.bf16 %v977, %v976
    %v1036 = vpack.c.bf16 %v979, %v978
    %v1037 = vpack.c.bf16 %v981, %v980
    %v1038 = vpack.c.bf16 %v983, %v982
    %v1039 = vpack.c.bf16 %v985, %v984
    %v1040 = vpack.c.bf16 %v987, %v986
    %v1041 = vpack.c.bf16 %v989, %v988
    %v1042 = vpack.c.bf16 %v991, %v990
    %v1043 = vpack.c.bf16 %v993, %v992
    %v1044 = vpack.c.bf16 %v995, %v994
    %v1046 = vperm.slane %v1012, 0
    %v1064 = vunpack.c.l.b16 %v996
    %v1065 = vunpack.c.l.b16 %v997
    %v1066 = vunpack.c.l.b16 %v998
    %v1067 = vunpack.c.l.b16 %v999
    %v1068 = vunpack.c.l.b16 %v1000
    %v1069 = vunpack.c.l.b16 %v1001
    %v1070 = vunpack.c.l.b16 %v1002
    %v1071 = vunpack.c.l.b16 %v1003
    %v1072 = vunpack.c.l.b16 %v1004
    %v1073 = vunpack.c.l.b16 %v1005
    %v1074 = vunpack.c.l.b16 %v1006
    %v1075 = vunpack.c.l.b16 %v1007
    %v1076 = vunpack.c.l.b16 %v1008
    %v1077 = vunpack.c.l.b16 %v1009
    %v1078 = vunpack.c.l.b16 %v1010
    %v1079 = vunpack.c.l.b16 %v1011
    %v1080 = vpack.c.b16 %v1065, %v1064
    %v1081 = vpack.c.b16 %v1067, %v1066
    %v1082 = vpack.c.b16 %v1069, %v1068
    %v1083 = vpack.c.b16 %v1071, %v1070
    %v1084 = vpack.c.b16 %v1073, %v1072
    %v1085 = vpack.c.b16 %v1075, %v1074
    %v1086 = vpack.c.b16 %v1077, %v1076
    %v1087 = vpack.c.b16 %v1079, %v1078
    %1096 = vmatpush.bf16.msra.mxu0 %v1087
    %1097 = vmatpush.bf16.msra.mxu0 %v1086
    %1098 = vmatpush.bf16.msra.mxu0 %v1085
    %1099 = vmatpush.bf16.msra.mxu0 %v1084
    %1100 = vmatpush.bf16.msra.mxu0 %v1083
    %1101 = vmatpush.bf16.msra.mxu0 %v1082
    %1102 = vmatpush.bf16.msra.mxu0 %v1081
    %1103 = vmatpush.bf16.msra.mxu0 %v1080
    %1104 = vmatmul.bf16.gmra.mxu0 %v1013
    %v1105 = vpop.f32.mrf.mxu0
    %v1106 = vadd.f32 %v1046, %v1105
    %v1107 = vpop.f32.mrf.mxu0
    %v1108 = vadd.f32 %v1046, %v1107
    %1109 = vmatmul.bf16.gmra.mxu0 %v1014
    %v1110 = vpop.f32.mrf.mxu0
    %v1111 = vadd.f32 %v1046, %v1110
    %v1112 = vpop.f32.mrf.mxu0
    %v1113 = vadd.f32 %v1046, %v1112
    %1114 = vmatmul.bf16.gmra.mxu0 %v1015
    %v1115 = vpop.f32.mrf.mxu0
    %v1116 = vadd.f32 %v1046, %v1115
    %v1117 = vpop.f32.mrf.mxu0
    %v1118 = vadd.f32 %v1046, %v1117
    %1119 = vmatmul.bf16.gmra.mxu0 %v1016
    %v1120 = vpop.f32.mrf.mxu0
    %v1121 = vadd.f32 %v1046, %v1120
    %v1122 = vpop.f32.mrf.mxu0
    %v1123 = vadd.f32 %v1046, %v1122
    %1124 = vmatmul.bf16.gmra.mxu0 %v1017
    %v1125 = vpop.f32.mrf.mxu0
    %v1126 = vadd.f32 %v1046, %v1125
    %v1127 = vpop.f32.mrf.mxu0
    %v1128 = vadd.f32 %v1046, %v1127
    %1129 = vmatmul.bf16.gmra.mxu0 %v1018
    %v1130 = vpop.f32.mrf.mxu0
    %v1131 = vadd.f32 %v1046, %v1130
    %v1132 = vpop.f32.mrf.mxu0
    %v1133 = vadd.f32 %v1046, %v1132
    %1134 = vmatmul.bf16.gmra.mxu0 %v1019
    %v1135 = vpop.f32.mrf.mxu0
    %v1136 = vadd.f32 %v1046, %v1135
    %v1137 = vpop.f32.mrf.mxu0
    %v1138 = vadd.f32 %v1046, %v1137
    %1139 = vmatmul.bf16.gmra.mxu0 %v1020
    %v1140 = vpop.f32.mrf.mxu0
    %v1141 = vadd.f32 %v1046, %v1140
    %v1142 = vpop.f32.mrf.mxu0
    %v1143 = vadd.f32 %v1046, %v1142
    %1144 = vmatmul.bf16.gmra.mxu0 %v1021
    %v1145 = vpop.f32.mrf.mxu0
    %v1146 = vadd.f32 %v1046, %v1145
    %v1147 = vpop.f32.mrf.mxu0
    %v1148 = vadd.f32 %v1046, %v1147
    %1149 = vmatmul.bf16.gmra.mxu0 %v1022
    %v1150 = vpop.f32.mrf.mxu0
    %v1151 = vadd.f32 %v1046, %v1150
    %v1152 = vpop.f32.mrf.mxu0
    %v1153 = vadd.f32 %v1046, %v1152
    %1154 = vmatmul.bf16.gmra.mxu0 %v1023
    %v1155 = vpop.f32.mrf.mxu0
    %v1156 = vadd.f32 %v1046, %v1155
    %v1157 = vpop.f32.mrf.mxu0
    %v1158 = vadd.f32 %v1046, %v1157
    %1159 = vmatmul.bf16.gmra.mxu0 %v1024
    %v1160 = vpop.f32.mrf.mxu0
    %v1161 = vadd.f32 %v1046, %v1160
    %v1162 = vpop.f32.mrf.mxu0
    %v1163 = vadd.f32 %v1046, %v1162
    %1164 = vmatmul.bf16.gmra.mxu0 %v1025
    %v1165 = vpop.f32.mrf.mxu0
    %v1166 = vadd.f32 %v1046, %v1165
    %v1167 = vpop.f32.mrf.mxu0
    %v1168 = vadd.f32 %v1046, %v1167
    %1169 = vmatmul.bf16.gmra.mxu0 %v1026
    %v1170 = vpop.f32.mrf.mxu0
    %v1171 = vadd.f32 %v1046, %v1170
    %v1172 = vpop.f32.mrf.mxu0
    %v1173 = vadd.f32 %v1046, %v1172
    %1174 = vmatmul.bf16.gmra.mxu0 %v1027
    %v1175 = vpop.f32.mrf.mxu0
    %v1176 = vadd.f32 %v1046, %v1175
    %v1177 = vpop.f32.mrf.mxu0
    %v1178 = vadd.f32 %v1046, %v1177
    %1179 = vmatmul.bf16.gmra.mxu0 %v1028
    %v1180 = vpop.f32.mrf.mxu0
    %v1181 = vadd.f32 %v1046, %v1180
    %v1182 = vpop.f32.mrf.mxu0
    %v1183 = vadd.f32 %v1046, %v1182
    %1184 = vmatmul.bf16.gmra.mxu0 %v1029
    %v1185 = vpop.f32.mrf.mxu0
    %v1186 = vadd.f32 %v1046, %v1185
    %v1187 = vpop.f32.mrf.mxu0
    %v1188 = vadd.f32 %v1046, %v1187
    %1189 = vmatmul.bf16.gmra.mxu0 %v1030
    %v1190 = vpop.f32.mrf.mxu0
    %v1191 = vadd.f32 %v1046, %v1190
    %v1192 = vpop.f32.mrf.mxu0
    %v1193 = vadd.f32 %v1046, %v1192
    %1194 = vmatmul.bf16.gmra.mxu0 %v1031
    %v1195 = vpop.f32.mrf.mxu0
    %v1196 = vadd.f32 %v1046, %v1195
    %v1197 = vpop.f32.mrf.mxu0
    %v1198 = vadd.f32 %v1046, %v1197
    %1199 = vmatmul.bf16.gmra.mxu0 %v1032
    %v1200 = vpop.f32.mrf.mxu0
    %v1201 = vadd.f32 %v1046, %v1200
    %v1202 = vpop.f32.mrf.mxu0
    %v1203 = vadd.f32 %v1046, %v1202
    %1204 = vmatmul.bf16.gmra.mxu0 %v1033
    %v1205 = vpop.f32.mrf.mxu0
    %v1206 = vadd.f32 %v1046, %v1205
    %v1207 = vpop.f32.mrf.mxu0
    %v1208 = vadd.f32 %v1046, %v1207
    %1209 = vmatmul.bf16.gmra.mxu0 %v1034
    %v1210 = vpop.f32.mrf.mxu0
    %v1211 = vadd.f32 %v1046, %v1210
    %v1212 = vpop.f32.mrf.mxu0
    %v1213 = vadd.f32 %v1046, %v1212
    %1214 = vmatmul.bf16.gmra.mxu0 %v1035
    %v1215 = vpop.f32.mrf.mxu0
    %v1216 = vadd.f32 %v1046, %v1215
    %v1217 = vpop.f32.mrf.mxu0
    %v1218 = vadd.f32 %v1046, %v1217
    %1219 = vmatmul.bf16.gmra.mxu0 %v1036
    %v1220 = vpop.f32.mrf.mxu0
    %v1221 = vadd.f32 %v1046, %v1220
    %v1222 = vpop.f32.mrf.mxu0
    %v1223 = vadd.f32 %v1046, %v1222
    %1224 = vmatmul.bf16.gmra.mxu0 %v1037
    %v1225 = vpop.f32.mrf.mxu0
    %v1226 = vadd.f32 %v1046, %v1225
    %v1227 = vpop.f32.mrf.mxu0
    %v1228 = vadd.f32 %v1046, %v1227
    %1229 = vmatmul.bf16.gmra.mxu0 %v1038
    %v1230 = vpop.f32.mrf.mxu0
    %v1231 = vadd.f32 %v1046, %v1230
    %v1232 = vpop.f32.mrf.mxu0
    %v1233 = vadd.f32 %v1046, %v1232
    %1234 = vmatmul.bf16.gmra.mxu0 %v1039
    %v1235 = vpop.f32.mrf.mxu0
    %v1236 = vadd.f32 %v1046, %v1235
    %v1237 = vpop.f32.mrf.mxu0
    %v1238 = vadd.f32 %v1046, %v1237
    %1239 = vmatmul.bf16.gmra.mxu0 %v1040
    %v1240 = vpop.f32.mrf.mxu0
    %v1241 = vadd.f32 %v1046, %v1240
    %v1242 = vpop.f32.mrf.mxu0
    %v1243 = vadd.f32 %v1046, %v1242
    %1244 = vmatmul.bf16.gmra.mxu0 %v1041
    %v1245 = vpop.f32.mrf.mxu0
    %v1246 = vadd.f32 %v1046, %v1245
    %v1247 = vpop.f32.mrf.mxu0
    %v1248 = vadd.f32 %v1046, %v1247
    %1249 = vmatmul.bf16.gmra.mxu0 %v1042
    %v1250 = vpop.f32.mrf.mxu0
    %v1251 = vadd.f32 %v1046, %v1250
    %v1252 = vpop.f32.mrf.mxu0
    %v1253 = vadd.f32 %v1046, %v1252
    %1254 = vmatmul.bf16.gmra.mxu0 %v1043
    %v1255 = vpop.f32.mrf.mxu0
    %v1256 = vadd.f32 %v1046, %v1255
    %v1257 = vpop.f32.mrf.mxu0
    %v1258 = vadd.f32 %v1046, %v1257
    %1259 = vmatmul.bf16.gmra.mxu0 %v1044
    %v1260 = vpop.f32.mrf.mxu0
    %v1261 = vadd.f32 %v1046, %v1260
    %v1262 = vpop.f32.mrf.mxu0
    %v1263 = vadd.f32 %v1046, %v1262
    %1264 = vdwg.mxu0
    %v1265 = vtanh.pop %v1106
    %v1266 = vtanh.pop %v1108
    %v1267 = vtanh.pop %v1111
    %v1268 = vtanh.pop %v1113
    %v1269 = vtanh.pop %v1116
    %v1270 = vtanh.pop %v1118
    %v1271 = vtanh.pop %v1121
    %v1272 = vtanh.pop %v1123
    %v1273 = vtanh.pop %v1126
    %v1274 = vtanh.pop %v1128
    %v1275 = vtanh.pop %v1131
    %v1276 = vtanh.pop %v1133
    %v1277 = vtanh.pop %v1136
    %v1278 = vtanh.pop %v1138
    %v1279 = vtanh.pop %v1141
    %v1280 = vtanh.pop %v1143
    %v1281 = vtanh.pop %v1146
    %v1282 = vtanh.pop %v1148
    %v1283 = vtanh.pop %v1151
    %v1284 = vtanh.pop %v1153
    %v1285 = vtanh.pop %v1156
    %v1286 = vtanh.pop %v1158
    %v1287 = vtanh.pop %v1161
    %v1288 = vtanh.pop %v1163
    %v1289 = vtanh.pop %v1166
    %v1290 = vtanh.pop %v1168
    %v1291 = vtanh.pop %v1171
    %v1292 = vtanh.pop %v1173
    %v1293 = vtanh.pop %v1176
    %v1294 = vtanh.pop %v1178
    %v1295 = vtanh.pop %v1181
    %v1296 = vtanh.pop %v1183
    %v1297 = vtanh.pop %v1186
    %v1298 = vtanh.pop %v1188
    %v1299 = vtanh.pop %v1191
    %v1300 = vtanh.pop %v1193
    %v1301 = vtanh.pop %v1196
    %v1302 = vtanh.pop %v1198
    %v1303 = vtanh.pop %v1201
    %v1304 = vtanh.pop %v1203
    %v1305 = vtanh.pop %v1206
    %v1306 = vtanh.pop %v1208
    %v1307 = vtanh.pop %v1211
    %v1308 = vtanh.pop %v1213
    %v1309 = vtanh.pop %v1216
    %v1310 = vtanh.pop %v1218
    %v1311 = vtanh.pop %v1221
    %v1312 = vtanh.pop %v1223
    %v1313 = vtanh.pop %v1226
    %v1314 = vtanh.pop %v1228
    %v1315 = vtanh.pop %v1231
    %v1316 = vtanh.pop %v1233
    %v1317 = vtanh.pop %v1236
    %v1318 = vtanh.pop %v1238
    %v1319 = vtanh.pop %v1241
    %v1320 = vtanh.pop %v1243
    %v1321 = vtanh.pop %v1246
    %v1322 = vtanh.pop %v1248
    %v1323 = vtanh.pop %v1251
    %v1324 = vtanh.pop %v1253
    %v1325 = vtanh.pop %v1256
    %v1326 = vtanh.pop %v1258
    %v1327 = vtanh.pop %v1261
    %v1328 = vtanh.pop %v1263
    %s1329 = scalar_lea.vmem %s3, 64
    %v1330 = vld [vmem:[%s1329] sm:$0xf]
    %v1331 = vld [vmem:[%s1329 + $0x4] sm:$0xf]
    %v1332 = vld [vmem:[%s1329 + $0x8] sm:$0xf]
    %v1333 = vld [vmem:[%s1329 + $0xc] sm:$0xf]
    %v1334 = vld [vmem:[%s1329 + $0x10] sm:$0xf]
    %v1335 = vld [vmem:[%s1329 + $0x14] sm:$0xf]
    %v1336 = vld [vmem:[%s1329 + $0x18] sm:$0xf]
    %v1337 = vld [vmem:[%s1329 + $0x1c] sm:$0xf]
    %v1338 = vld [vmem:[%s1329 + $0x20] sm:$0xf]
    %v1339 = vld [vmem:[%s1329 + $0x24] sm:$0xf]
    %v1340 = vld [vmem:[%s1329 + $0x28] sm:$0xf]
    %v1341 = vld [vmem:[%s1329 + $0x2c] sm:$0xf]
    %v1342 = vld [vmem:[%s1329 + $0x30] sm:$0xf]
    %v1343 = vld [vmem:[%s1329 + $0x34] sm:$0xf]
    %v1344 = vld [vmem:[%s1329 + $0x38] sm:$0xf]
    %v1345 = vld [vmem:[%s1329 + $0x3c] sm:$0xf]
    %s1346 = scalar_lea.vmem %s4, 1
    %v1347 = vld [vmem:[%s1346] sm:$0x1]
    %v1348 = vpack.c.bf16 %v1266, %v1265
    %v1349 = vpack.c.bf16 %v1268, %v1267
    %v1350 = vpack.c.bf16 %v1270, %v1269
    %v1351 = vpack.c.bf16 %v1272, %v1271
    %v1352 = vpack.c.bf16 %v1274, %v1273
    %v1353 = vpack.c.bf16 %v1276, %v1275
    %v1354 = vpack.c.bf16 %v1278, %v1277
    %v1355 = vpack.c.bf16 %v1280, %v1279
    %v1356 = vpack.c.bf16 %v1282, %v1281
    %v1357 = vpack.c.bf16 %v1284, %v1283
    %v1358 = vpack.c.bf16 %v1286, %v1285
    %v1359 = vpack.c.bf16 %v1288, %v1287
    %v1360 = vpack.c.bf16 %v1290, %v1289
    %v1361 = vpack.c.bf16 %v1292, %v1291
    %v1362 = vpack.c.bf16 %v1294, %v1293
    %v1363 = vpack.c.bf16 %v1296, %v1295
    %v1364 = vpack.c.bf16 %v1298, %v1297
    %v1365 = vpack.c.bf16 %v1300, %v1299
    %v1366 = vpack.c.bf16 %v1302, %v1301
    %v1367 = vpack.c.bf16 %v1304, %v1303
    %v1368 = vpack.c.bf16 %v1306, %v1305
    %v1369 = vpack.c.bf16 %v1308, %v1307
    %v1370 = vpack.c.bf16 %v1310, %v1309
    %v1371 = vpack.c.bf16 %v1312, %v1311
    %v1372 = vpack.c.bf16 %v1314, %v1313
    %v1373 = vpack.c.bf16 %v1316, %v1315
    %v1374 = vpack.c.bf16 %v1318, %v1317
    %v1375 = vpack.c.bf16 %v1320, %v1319
    %v1376 = vpack.c.bf16 %v1322, %v1321
    %v1377 = vpack.c.bf16 %v1324, %v1323
    %v1378 = vpack.c.bf16 %v1326, %v1325
    %v1379 = vpack.c.bf16 %v1328, %v1327
    %v1381 = vperm.slane %v1347, 0
    %v1399 = vunpack.c.l.b16 %v1330
    %v1400 = vunpack.c.l.b16 %v1331
    %v1401 = vunpack.c.l.b16 %v1332
    %v1402 = vunpack.c.l.b16 %v1333
    %v1403 = vunpack.c.l.b16 %v1334
    %v1404 = vunpack.c.l.b16 %v1335
    %v1405 = vunpack.c.l.b16 %v1336
    %v1406 = vunpack.c.l.b16 %v1337
    %v1407 = vunpack.c.l.b16 %v1338
    %v1408 = vunpack.c.l.b16 %v1339
    %v1409 = vunpack.c.l.b16 %v1340
    %v1410 = vunpack.c.l.b16 %v1341
    %v1411 = vunpack.c.l.b16 %v1342
    %v1412 = vunpack.c.l.b16 %v1343
    %v1413 = vunpack.c.l.b16 %v1344
    %v1414 = vunpack.c.l.b16 %v1345
    %v1415 = vpack.c.b16 %v1400, %v1399
    %v1416 = vpack.c.b16 %v1402, %v1401
    %v1417 = vpack.c.b16 %v1404, %v1403
    %v1418 = vpack.c.b16 %v1406, %v1405
    %v1419 = vpack.c.b16 %v1408, %v1407
    %v1420 = vpack.c.b16 %v1410, %v1409
    %v1421 = vpack.c.b16 %v1412, %v1411
    %v1422 = vpack.c.b16 %v1414, %v1413
    %1431 = vmatpush.bf16.msra.mxu0 %v1422
    %1432 = vmatpush.bf16.msra.mxu0 %v1421
    %1433 = vmatpush.bf16.msra.mxu0 %v1420
    %1434 = vmatpush.bf16.msra.mxu0 %v1419
    %1435 = vmatpush.bf16.msra.mxu0 %v1418
    %1436 = vmatpush.bf16.msra.mxu0 %v1417
    %1437 = vmatpush.bf16.msra.mxu0 %v1416
    %1438 = vmatpush.bf16.msra.mxu0 %v1415
    %1439 = vmatmul.bf16.gmra.mxu0 %v1348
    %v1440 = vpop.f32.mrf.mxu0
    %v1441 = vadd.f32 %v1381, %v1440
    %v1442 = vpop.f32.mrf.mxu0
    %v1443 = vadd.f32 %v1381, %v1442
    %1444 = vmatmul.bf16.gmra.mxu0 %v1349
    %v1445 = vpop.f32.mrf.mxu0
    %v1446 = vadd.f32 %v1381, %v1445
    %v1447 = vpop.f32.mrf.mxu0
    %v1448 = vadd.f32 %v1381, %v1447
    %1449 = vmatmul.bf16.gmra.mxu0 %v1350
    %v1450 = vpop.f32.mrf.mxu0
    %v1451 = vadd.f32 %v1381, %v1450
    %v1452 = vpop.f32.mrf.mxu0
    %v1453 = vadd.f32 %v1381, %v1452
    %1454 = vmatmul.bf16.gmra.mxu0 %v1351
    %v1455 = vpop.f32.mrf.mxu0
    %v1456 = vadd.f32 %v1381, %v1455
    %v1457 = vpop.f32.mrf.mxu0
    %v1458 = vadd.f32 %v1381, %v1457
    %1459 = vmatmul.bf16.gmra.mxu0 %v1352
    %v1460 = vpop.f32.mrf.mxu0
    %v1461 = vadd.f32 %v1381, %v1460
    %v1462 = vpop.f32.mrf.mxu0
    %v1463 = vadd.f32 %v1381, %v1462
    %1464 = vmatmul.bf16.gmra.mxu0 %v1353
    %v1465 = vpop.f32.mrf.mxu0
    %v1466 = vadd.f32 %v1381, %v1465
    %v1467 = vpop.f32.mrf.mxu0
    %v1468 = vadd.f32 %v1381, %v1467
    %1469 = vmatmul.bf16.gmra.mxu0 %v1354
    %v1470 = vpop.f32.mrf.mxu0
    %v1471 = vadd.f32 %v1381, %v1470
    %v1472 = vpop.f32.mrf.mxu0
    %v1473 = vadd.f32 %v1381, %v1472
    %1474 = vmatmul.bf16.gmra.mxu0 %v1355
    %v1475 = vpop.f32.mrf.mxu0
    %v1476 = vadd.f32 %v1381, %v1475
    %v1477 = vpop.f32.mrf.mxu0
    %v1478 = vadd.f32 %v1381, %v1477
    %1479 = vmatmul.bf16.gmra.mxu0 %v1356
    %v1480 = vpop.f32.mrf.mxu0
    %v1481 = vadd.f32 %v1381, %v1480
    %v1482 = vpop.f32.mrf.mxu0
    %v1483 = vadd.f32 %v1381, %v1482
    %1484 = vmatmul.bf16.gmra.mxu0 %v1357
    %v1485 = vpop.f32.mrf.mxu0
    %v1486 = vadd.f32 %v1381, %v1485
    %v1487 = vpop.f32.mrf.mxu0
    %v1488 = vadd.f32 %v1381, %v1487
    %1489 = vmatmul.bf16.gmra.mxu0 %v1358
    %v1490 = vpop.f32.mrf.mxu0
    %v1491 = vadd.f32 %v1381, %v1490
    %v1492 = vpop.f32.mrf.mxu0
    %v1493 = vadd.f32 %v1381, %v1492
    %1494 = vmatmul.bf16.gmra.mxu0 %v1359
    %v1495 = vpop.f32.mrf.mxu0
    %v1496 = vadd.f32 %v1381, %v1495
    %v1497 = vpop.f32.mrf.mxu0
    %v1498 = vadd.f32 %v1381, %v1497
    %1499 = vmatmul.bf16.gmra.mxu0 %v1360
    %v1500 = vpop.f32.mrf.mxu0
    %v1501 = vadd.f32 %v1381, %v1500
    %v1502 = vpop.f32.mrf.mxu0
    %v1503 = vadd.f32 %v1381, %v1502
    %1504 = vmatmul.bf16.gmra.mxu0 %v1361
    %v1505 = vpop.f32.mrf.mxu0
    %v1506 = vadd.f32 %v1381, %v1505
    %v1507 = vpop.f32.mrf.mxu0
    %v1508 = vadd.f32 %v1381, %v1507
    %1509 = vmatmul.bf16.gmra.mxu0 %v1362
    %v1510 = vpop.f32.mrf.mxu0
    %v1511 = vadd.f32 %v1381, %v1510
    %v1512 = vpop.f32.mrf.mxu0
    %v1513 = vadd.f32 %v1381, %v1512
    %1514 = vmatmul.bf16.gmra.mxu0 %v1363
    %v1515 = vpop.f32.mrf.mxu0
    %v1516 = vadd.f32 %v1381, %v1515
    %v1517 = vpop.f32.mrf.mxu0
    %v1518 = vadd.f32 %v1381, %v1517
    %1519 = vmatmul.bf16.gmra.mxu0 %v1364
    %v1520 = vpop.f32.mrf.mxu0
    %v1521 = vadd.f32 %v1381, %v1520
    %v1522 = vpop.f32.mrf.mxu0
    %v1523 = vadd.f32 %v1381, %v1522
    %1524 = vmatmul.bf16.gmra.mxu0 %v1365
    %v1525 = vpop.f32.mrf.mxu0
    %v1526 = vadd.f32 %v1381, %v1525
    %v1527 = vpop.f32.mrf.mxu0
    %v1528 = vadd.f32 %v1381, %v1527
    %1529 = vmatmul.bf16.gmra.mxu0 %v1366
    %v1530 = vpop.f32.mrf.mxu0
    %v1531 = vadd.f32 %v1381, %v1530
    %v1532 = vpop.f32.mrf.mxu0
    %v1533 = vadd.f32 %v1381, %v1532
    %1534 = vmatmul.bf16.gmra.mxu0 %v1367
    %v1535 = vpop.f32.mrf.mxu0
    %v1536 = vadd.f32 %v1381, %v1535
    %v1537 = vpop.f32.mrf.mxu0
    %v1538 = vadd.f32 %v1381, %v1537
    %1539 = vmatmul.bf16.gmra.mxu0 %v1368
    %v1540 = vpop.f32.mrf.mxu0
    %v1541 = vadd.f32 %v1381, %v1540
    %v1542 = vpop.f32.mrf.mxu0
    %v1543 = vadd.f32 %v1381, %v1542
    %1544 = vmatmul.bf16.gmra.mxu0 %v1369
    %v1545 = vpop.f32.mrf.mxu0
    %v1546 = vadd.f32 %v1381, %v1545
    %v1547 = vpop.f32.mrf.mxu0
    %v1548 = vadd.f32 %v1381, %v1547
    %1549 = vmatmul.bf16.gmra.mxu0 %v1370
    %v1550 = vpop.f32.mrf.mxu0
    %v1551 = vadd.f32 %v1381, %v1550
    %v1552 = vpop.f32.mrf.mxu0
    %v1553 = vadd.f32 %v1381, %v1552
    %1554 = vmatmul.bf16.gmra.mxu0 %v1371
    %v1555 = vpop.f32.mrf.mxu0
    %v1556 = vadd.f32 %v1381, %v1555
    %v1557 = vpop.f32.mrf.mxu0
    %v1558 = vadd.f32 %v1381, %v1557
    %1559 = vmatmul.bf16.gmra.mxu0 %v1372
    %v1560 = vpop.f32.mrf.mxu0
    %v1561 = vadd.f32 %v1381, %v1560
    %v1562 = vpop.f32.mrf.mxu0
    %v1563 = vadd.f32 %v1381, %v1562
    %1564 = vmatmul.bf16.gmra.mxu0 %v1373
    %v1565 = vpop.f32.mrf.mxu0
    %v1566 = vadd.f32 %v1381, %v1565
    %v1567 = vpop.f32.mrf.mxu0
    %v1568 = vadd.f32 %v1381, %v1567
    %1569 = vmatmul.bf16.gmra.mxu0 %v1374
    %v1570 = vpop.f32.mrf.mxu0
    %v1571 = vadd.f32 %v1381, %v1570
    %v1572 = vpop.f32.mrf.mxu0
    %v1573 = vadd.f32 %v1381, %v1572
    %1574 = vmatmul.bf16.gmra.mxu0 %v1375
    %v1575 = vpop.f32.mrf.mxu0
    %v1576 = vadd.f32 %v1381, %v1575
    %v1577 = vpop.f32.mrf.mxu0
    %v1578 = vadd.f32 %v1381, %v1577
    %1579 = vmatmul.bf16.gmra.mxu0 %v1376
    %v1580 = vpop.f32.mrf.mxu0
    %v1581 = vadd.f32 %v1381, %v1580
    %v1582 = vpop.f32.mrf.mxu0
    %v1583 = vadd.f32 %v1381, %v1582
    %1584 = vmatmul.bf16.gmra.mxu0 %v1377
    %v1585 = vpop.f32.mrf.mxu0
    %v1586 = vadd.f32 %v1381, %v1585
    %v1587 = vpop.f32.mrf.mxu0
    %v1588 = vadd.f32 %v1381, %v1587
    %1589 = vmatmul.bf16.gmra.mxu0 %v1378
    %v1590 = vpop.f32.mrf.mxu0
    %v1591 = vadd.f32 %v1381, %v1590
    %v1592 = vpop.f32.mrf.mxu0
    %v1593 = vadd.f32 %v1381, %v1592
    %1594 = vmatmul.bf16.gmra.mxu0 %v1379
    %v1595 = vpop.f32.mrf.mxu0
    %v1596 = vadd.f32 %v1381, %v1595
    %v1597 = vpop.f32.mrf.mxu0
    %v1598 = vadd.f32 %v1381, %v1597
    %1599 = vdwg.mxu0
    %v1600 = vtanh.pop %v1441
    %v1601 = vtanh.pop %v1443
    %v1602 = vtanh.pop %v1446
    %v1603 = vtanh.pop %v1448
    %v1604 = vtanh.pop %v1451
    %v1605 = vtanh.pop %v1453
    %v1606 = vtanh.pop %v1456
    %v1607 = vtanh.pop %v1458
    %v1608 = vtanh.pop %v1461
    %v1609 = vtanh.pop %v1463
    %v1610 = vtanh.pop %v1466
    %v1611 = vtanh.pop %v1468
    %v1612 = vtanh.pop %v1471
    %v1613 = vtanh.pop %v1473
    %v1614 = vtanh.pop %v1476
    %v1615 = vtanh.pop %v1478
    %v1616 = vtanh.pop %v1481
    %v1617 = vtanh.pop %v1483
    %v1618 = vtanh.pop %v1486
    %v1619 = vtanh.pop %v1488
    %v1620 = vtanh.pop %v1491
    %v1621 = vtanh.pop %v1493
    %v1622 = vtanh.pop %v1496
    %v1623 = vtanh.pop %v1498
    %v1624 = vtanh.pop %v1501
    %v1625 = vtanh.pop %v1503
    %v1626 = vtanh.pop %v1506
    %v1627 = vtanh.pop %v1508
    %v1628 = vtanh.pop %v1511
    %v1629 = vtanh.pop %v1513
    %v1630 = vtanh.pop %v1516
    %v1631 = vtanh.pop %v1518
    %v1632 = vtanh.pop %v1521
    %v1633 = vtanh.pop %v1523
    %v1634 = vtanh.pop %v1526
    %v1635 = vtanh.pop %v1528
    %v1636 = vtanh.pop %v1531
    %v1637 = vtanh.pop %v1533
    %v1638 = vtanh.pop %v1536
    %v1639 = vtanh.pop %v1538
    %v1640 = vtanh.pop %v1541
    %v1641 = vtanh.pop %v1543
    %v1642 = vtanh.pop %v1546
    %v1643 = vtanh.pop %v1548
    %v1644 = vtanh.pop %v1551
    %v1645 = vtanh.pop %v1553
    %v1646 = vtanh.pop %v1556
    %v1647 = vtanh.pop %v1558
    %v1648 = vtanh.pop %v1561
    %v1649 = vtanh.pop %v1563
    %v1650 = vtanh.pop %v1566
    %v1651 = vtanh.pop %v1568
    %v1652 = vtanh.pop %v1571
    %v1653 = vtanh.pop %v1573
    %v1654 = vtanh.pop %v1576
    %v1655 = vtanh.pop %v1578
    %v1656 = vtanh.pop %v1581
    %v1657 = vtanh.pop %v1583
    %v1658 = vtanh.pop %v1586
    %v1659 = vtanh.pop %v1588
    %v1660 = vtanh.pop %v1591
    %v1661 = vtanh.pop %v1593
    %v1662 = vtanh.pop %v1596
    %v1663 = vtanh.pop %v1598
    %s1664 = scalar_lea.vmem %s3, 128
    %v1665 = vld [vmem:[%s1664] sm:$0xf]
    %v1666 = vld [vmem:[%s1664 + $0x4] sm:$0xf]
    %v1667 = vld [vmem:[%s1664 + $0x8] sm:$0xf]
    %v1668 = vld [vmem:[%s1664 + $0xc] sm:$0xf]
    %v1669 = vld [vmem:[%s1664 + $0x10] sm:$0xf]
    %v1670 = vld [vmem:[%s1664 + $0x14] sm:$0xf]
    %v1671 = vld [vmem:[%s1664 + $0x18] sm:$0xf]
    %v1672 = vld [vmem:[%s1664 + $0x1c] sm:$0xf]
    %v1673 = vld [vmem:[%s1664 + $0x20] sm:$0xf]
    %v1674 = vld [vmem:[%s1664 + $0x24] sm:$0xf]
    %v1675 = vld [vmem:[%s1664 + $0x28] sm:$0xf]
    %v1676 = vld [vmem:[%s1664 + $0x2c] sm:$0xf]
    %v1677 = vld [vmem:[%s1664 + $0x30] sm:$0xf]
    %v1678 = vld [vmem:[%s1664 + $0x34] sm:$0xf]
    %v1679 = vld [vmem:[%s1664 + $0x38] sm:$0xf]
    %v1680 = vld [vmem:[%s1664 + $0x3c] sm:$0xf]
    %s1681 = scalar_lea.vmem %s4, 2
    %v1682 = vld [vmem:[%s1681] sm:$0x1]
    %v1683 = vpack.c.bf16 %v1601, %v1600
    %v1684 = vpack.c.bf16 %v1603, %v1602
    %v1685 = vpack.c.bf16 %v1605, %v1604
    %v1686 = vpack.c.bf16 %v1607, %v1606
    %v1687 = vpack.c.bf16 %v1609, %v1608
    %v1688 = vpack.c.bf16 %v1611, %v1610
    %v1689 = vpack.c.bf16 %v1613, %v1612
    %v1690 = vpack.c.bf16 %v1615, %v1614
    %v1691 = vpack.c.bf16 %v1617, %v1616
    %v1692 = vpack.c.bf16 %v1619, %v1618
    %v1693 = vpack.c.bf16 %v1621, %v1620
    %v1694 = vpack.c.bf16 %v1623, %v1622
    %v1695 = vpack.c.bf16 %v1625, %v1624
    %v1696 = vpack.c.bf16 %v1627, %v1626
    %v1697 = vpack.c.bf16 %v1629, %v1628
    %v1698 = vpack.c.bf16 %v1631, %v1630
    %v1699 = vpack.c.bf16 %v1633, %v1632
    %v1700 = vpack.c.bf16 %v1635, %v1634
    %v1701 = vpack.c.bf16 %v1637, %v1636
    %v1702 = vpack.c.bf16 %v1639, %v1638
    %v1703 = vpack.c.bf16 %v1641, %v1640
    %v1704 = vpack.c.bf16 %v1643, %v1642
    %v1705 = vpack.c.bf16 %v1645, %v1644
    %v1706 = vpack.c.bf16 %v1647, %v1646
    %v1707 = vpack.c.bf16 %v1649, %v1648
    %v1708 = vpack.c.bf16 %v1651, %v1650
    %v1709 = vpack.c.bf16 %v1653, %v1652
    %v1710 = vpack.c.bf16 %v1655, %v1654
    %v1711 = vpack.c.bf16 %v1657, %v1656
    %v1712 = vpack.c.bf16 %v1659, %v1658
    %v1713 = vpack.c.bf16 %v1661, %v1660
    %v1714 = vpack.c.bf16 %v1663, %v1662
    %v1716 = vperm.slane %v1682, 0
    %v1734 = vunpack.c.l.b16 %v1665
    %v1735 = vunpack.c.l.b16 %v1666
    %v1736 = vunpack.c.l.b16 %v1667
    %v1737 = vunpack.c.l.b16 %v1668
    %v1738 = vunpack.c.l.b16 %v1669
    %v1739 = vunpack.c.l.b16 %v1670
    %v1740 = vunpack.c.l.b16 %v1671
    %v1741 = vunpack.c.l.b16 %v1672
    %v1742 = vunpack.c.l.b16 %v1673
    %v1743 = vunpack.c.l.b16 %v1674
    %v1744 = vunpack.c.l.b16 %v1675
    %v1745 = vunpack.c.l.b16 %v1676
    %v1746 = vunpack.c.l.b16 %v1677
    %v1747 = vunpack.c.l.b16 %v1678
    %v1748 = vunpack.c.l.b16 %v1679
    %v1749 = vunpack.c.l.b16 %v1680
    %v1750 = vpack.c.b16 %v1735, %v1734
    %v1751 = vpack.c.b16 %v1737, %v1736
    %v1752 = vpack.c.b16 %v1739, %v1738
    %v1753 = vpack.c.b16 %v1741, %v1740
    %v1754 = vpack.c.b16 %v1743, %v1742
    %v1755 = vpack.c.b16 %v1745, %v1744
    %v1756 = vpack.c.b16 %v1747, %v1746
    %v1757 = vpack.c.b16 %v1749, %v1748
    %1766 = vmatpush.bf16.msra.mxu0 %v1757
    %1767 = vmatpush.bf16.msra.mxu0 %v1756
    %1768 = vmatpush.bf16.msra.mxu0 %v1755
    %1769 = vmatpush.bf16.msra.mxu0 %v1754
    %1770 = vmatpush.bf16.msra.mxu0 %v1753
    %1771 = vmatpush.bf16.msra.mxu0 %v1752
    %1772 = vmatpush.bf16.msra.mxu0 %v1751
    %1773 = vmatpush.bf16.msra.mxu0 %v1750
    %1774 = vmatmul.bf16.gmra.mxu0 %v1683
    %v1775 = vpop.f32.mrf.mxu0
    %v1776 = vadd.f32 %v1716, %v1775
    %v1777 = vpop.f32.mrf.mxu0
    %v1778 = vadd.f32 %v1716, %v1777
    %1779 = vmatmul.bf16.gmra.mxu0 %v1684
    %v1780 = vpop.f32.mrf.mxu0
    %v1781 = vadd.f32 %v1716, %v1780
    %v1782 = vpop.f32.mrf.mxu0
    %v1783 = vadd.f32 %v1716, %v1782
    %1784 = vmatmul.bf16.gmra.mxu0 %v1685
    %v1785 = vpop.f32.mrf.mxu0
    %v1786 = vadd.f32 %v1716, %v1785
    %v1787 = vpop.f32.mrf.mxu0
    %v1788 = vadd.f32 %v1716, %v1787
    %1789 = vmatmul.bf16.gmra.mxu0 %v1686
    %v1790 = vpop.f32.mrf.mxu0
    %v1791 = vadd.f32 %v1716, %v1790
    %v1792 = vpop.f32.mrf.mxu0
    %v1793 = vadd.f32 %v1716, %v1792
    %1794 = vmatmul.bf16.gmra.mxu0 %v1687
    %v1795 = vpop.f32.mrf.mxu0
    %v1796 = vadd.f32 %v1716, %v1795
    %v1797 = vpop.f32.mrf.mxu0
    %v1798 = vadd.f32 %v1716, %v1797
    %1799 = vmatmul.bf16.gmra.mxu0 %v1688
    %v1800 = vpop.f32.mrf.mxu0
    %v1801 = vadd.f32 %v1716, %v1800
    %v1802 = vpop.f32.mrf.mxu0
    %v1803 = vadd.f32 %v1716, %v1802
    %1804 = vmatmul.bf16.gmra.mxu0 %v1689
    %v1805 = vpop.f32.mrf.mxu0
    %v1806 = vadd.f32 %v1716, %v1805
    %v1807 = vpop.f32.mrf.mxu0
    %v1808 = vadd.f32 %v1716, %v1807
    %1809 = vmatmul.bf16.gmra.mxu0 %v1690
    %v1810 = vpop.f32.mrf.mxu0
    %v1811 = vadd.f32 %v1716, %v1810
    %v1812 = vpop.f32.mrf.mxu0
    %v1813 = vadd.f32 %v1716, %v1812
    %1814 = vmatmul.bf16.gmra.mxu0 %v1691
    %v1815 = vpop.f32.mrf.mxu0
    %v1816 = vadd.f32 %v1716, %v1815
    %v1817 = vpop.f32.mrf.mxu0
    %v1818 = vadd.f32 %v1716, %v1817
    %1819 = vmatmul.bf16.gmra.mxu0 %v1692
    %v1820 = vpop.f32.mrf.mxu0
    %v1821 = vadd.f32 %v1716, %v1820
    %v1822 = vpop.f32.mrf.mxu0
    %v1823 = vadd.f32 %v1716, %v1822
    %1824 = vmatmul.bf16.gmra.mxu0 %v1693
    %v1825 = vpop.f32.mrf.mxu0
    %v1826 = vadd.f32 %v1716, %v1825
    %v1827 = vpop.f32.mrf.mxu0
    %v1828 = vadd.f32 %v1716, %v1827
    %1829 = vmatmul.bf16.gmra.mxu0 %v1694
    %v1830 = vpop.f32.mrf.mxu0
    %v1831 = vadd.f32 %v1716, %v1830
    %v1832 = vpop.f32.mrf.mxu0
    %v1833 = vadd.f32 %v1716, %v1832
    %1834 = vmatmul.bf16.gmra.mxu0 %v1695
    %v1835 = vpop.f32.mrf.mxu0
    %v1836 = vadd.f32 %v1716, %v1835
    %v1837 = vpop.f32.mrf.mxu0
    %v1838 = vadd.f32 %v1716, %v1837
    %1839 = vmatmul.bf16.gmra.mxu0 %v1696
    %v1840 = vpop.f32.mrf.mxu0
    %v1841 = vadd.f32 %v1716, %v1840
    %v1842 = vpop.f32.mrf.mxu0
    %v1843 = vadd.f32 %v1716, %v1842
    %1844 = vmatmul.bf16.gmra.mxu0 %v1697
    %v1845 = vpop.f32.mrf.mxu0
    %v1846 = vadd.f32 %v1716, %v1845
    %v1847 = vpop.f32.mrf.mxu0
    %v1848 = vadd.f32 %v1716, %v1847
    %1849 = vmatmul.bf16.gmra.mxu0 %v1698
    %v1850 = vpop.f32.mrf.mxu0
    %v1851 = vadd.f32 %v1716, %v1850
    %v1852 = vpop.f32.mrf.mxu0
    %v1853 = vadd.f32 %v1716, %v1852
    %1854 = vmatmul.bf16.gmra.mxu0 %v1699
    %v1855 = vpop.f32.mrf.mxu0
    %v1856 = vadd.f32 %v1716, %v1855
    %v1857 = vpop.f32.mrf.mxu0
    %v1858 = vadd.f32 %v1716, %v1857
    %1859 = vmatmul.bf16.gmra.mxu0 %v1700
    %v1860 = vpop.f32.mrf.mxu0
    %v1861 = vadd.f32 %v1716, %v1860
    %v1862 = vpop.f32.mrf.mxu0
    %v1863 = vadd.f32 %v1716, %v1862
    %1864 = vmatmul.bf16.gmra.mxu0 %v1701
    %v1865 = vpop.f32.mrf.mxu0
    %v1866 = vadd.f32 %v1716, %v1865
    %v1867 = vpop.f32.mrf.mxu0
    %v1868 = vadd.f32 %v1716, %v1867
    %1869 = vmatmul.bf16.gmra.mxu0 %v1702
    %v1870 = vpop.f32.mrf.mxu0
    %v1871 = vadd.f32 %v1716, %v1870
    %v1872 = vpop.f32.mrf.mxu0
    %v1873 = vadd.f32 %v1716, %v1872
    %1874 = vmatmul.bf16.gmra.mxu0 %v1703
    %v1875 = vpop.f32.mrf.mxu0
    %v1876 = vadd.f32 %v1716, %v1875
    %v1877 = vpop.f32.mrf.mxu0
    %v1878 = vadd.f32 %v1716, %v1877
    %1879 = vmatmul.bf16.gmra.mxu0 %v1704
    %v1880 = vpop.f32.mrf.mxu0
    %v1881 = vadd.f32 %v1716, %v1880
    %v1882 = vpop.f32.mrf.mxu0
    %v1883 = vadd.f32 %v1716, %v1882
    %1884 = vmatmul.bf16.gmra.mxu0 %v1705
    %v1885 = vpop.f32.mrf.mxu0
    %v1886 = vadd.f32 %v1716, %v1885
    %v1887 = vpop.f32.mrf.mxu0
    %v1888 = vadd.f32 %v1716, %v1887
    %1889 = vmatmul.bf16.gmra.mxu0 %v1706
    %v1890 = vpop.f32.mrf.mxu0
    %v1891 = vadd.f32 %v1716, %v1890
    %v1892 = vpop.f32.mrf.mxu0
    %v1893 = vadd.f32 %v1716, %v1892
    %1894 = vmatmul.bf16.gmra.mxu0 %v1707
    %v1895 = vpop.f32.mrf.mxu0
    %v1896 = vadd.f32 %v1716, %v1895
    %v1897 = vpop.f32.mrf.mxu0
    %v1898 = vadd.f32 %v1716, %v1897
    %1899 = vmatmul.bf16.gmra.mxu0 %v1708
    %v1900 = vpop.f32.mrf.mxu0
    %v1901 = vadd.f32 %v1716, %v1900
    %v1902 = vpop.f32.mrf.mxu0
    %v1903 = vadd.f32 %v1716, %v1902
    %1904 = vmatmul.bf16.gmra.mxu0 %v1709
    %v1905 = vpop.f32.mrf.mxu0
    %v1906 = vadd.f32 %v1716, %v1905
    %v1907 = vpop.f32.mrf.mxu0
    %v1908 = vadd.f32 %v1716, %v1907
    %1909 = vmatmul.bf16.gmra.mxu0 %v1710
    %v1910 = vpop.f32.mrf.mxu0
    %v1911 = vadd.f32 %v1716, %v1910
    %v1912 = vpop.f32.mrf.mxu0
    %v1913 = vadd.f32 %v1716, %v1912
    %1914 = vmatmul.bf16.gmra.mxu0 %v1711
    %v1915 = vpop.f32.mrf.mxu0
    %v1916 = vadd.f32 %v1716, %v1915
    %v1917 = vpop.f32.mrf.mxu0
    %v1918 = vadd.f32 %v1716, %v1917
    %1919 = vmatmul.bf16.gmra.mxu0 %v1712
    %v1920 = vpop.f32.mrf.mxu0
    %v1921 = vadd.f32 %v1716, %v1920
    %v1922 = vpop.f32.mrf.mxu0
    %v1923 = vadd.f32 %v1716, %v1922
    %1924 = vmatmul.bf16.gmra.mxu0 %v1713
    %v1925 = vpop.f32.mrf.mxu0
    %v1926 = vadd.f32 %v1716, %v1925
    %v1927 = vpop.f32.mrf.mxu0
    %v1928 = vadd.f32 %v1716, %v1927
    %1929 = vmatmul.bf16.gmra.mxu0 %v1714
    %v1930 = vpop.f32.mrf.mxu0
    %v1931 = vadd.f32 %v1716, %v1930
    %v1932 = vpop.f32.mrf.mxu0
    %v1933 = vadd.f32 %v1716, %v1932
    %1934 = vdwg.mxu0
    %v1935 = vtanh.pop %v1776
    %v1936 = vtanh.pop %v1778
    %v1937 = vtanh.pop %v1781
    %v1938 = vtanh.pop %v1783
    %v1939 = vtanh.pop %v1786
    %v1940 = vtanh.pop %v1788
    %v1941 = vtanh.pop %v1791
    %v1942 = vtanh.pop %v1793
    %v1943 = vtanh.pop %v1796
    %v1944 = vtanh.pop %v1798
    %v1945 = vtanh.pop %v1801
    %v1946 = vtanh.pop %v1803
    %v1947 = vtanh.pop %v1806
    %v1948 = vtanh.pop %v1808
    %v1949 = vtanh.pop %v1811
    %v1950 = vtanh.pop %v1813
    %v1951 = vtanh.pop %v1816
    %v1952 = vtanh.pop %v1818
    %v1953 = vtanh.pop %v1821
    %v1954 = vtanh.pop %v1823
    %v1955 = vtanh.pop %v1826
    %v1956 = vtanh.pop %v1828
    %v1957 = vtanh.pop %v1831
    %v1958 = vtanh.pop %v1833
    %v1959 = vtanh.pop %v1836
    %v1960 = vtanh.pop %v1838
    %v1961 = vtanh.pop %v1841
    %v1962 = vtanh.pop %v1843
    %v1963 = vtanh.pop %v1846
    %v1964 = vtanh.pop %v1848
    %v1965 = vtanh.pop %v1851
    %v1966 = vtanh.pop %v1853
    %v1967 = vtanh.pop %v1856
    %v1968 = vtanh.pop %v1858
    %v1969 = vtanh.pop %v1861
    %v1970 = vtanh.pop %v1863
    %v1971 = vtanh.pop %v1866
    %v1972 = vtanh.pop %v1868
    %v1973 = vtanh.pop %v1871
    %v1974 = vtanh.pop %v1873
    %v1975 = vtanh.pop %v1876
    %v1976 = vtanh.pop %v1878
    %v1977 = vtanh.pop %v1881
    %v1978 = vtanh.pop %v1883
    %v1979 = vtanh.pop %v1886
    %v1980 = vtanh.pop %v1888
    %v1981 = vtanh.pop %v1891
    %v1982 = vtanh.pop %v1893
    %v1983 = vtanh.pop %v1896
    %v1984 = vtanh.pop %v1898
    %v1985 = vtanh.pop %v1901
    %v1986 = vtanh.pop %v1903
    %v1987 = vtanh.pop %v1906
    %v1988 = vtanh.pop %v1908
    %v1989 = vtanh.pop %v1911
    %v1990 = vtanh.pop %v1913
    %v1991 = vtanh.pop %v1916
    %v1992 = vtanh.pop %v1918
    %v1993 = vtanh.pop %v1921
    %v1994 = vtanh.pop %v1923
    %v1995 = vtanh.pop %v1926
    %v1996 = vtanh.pop %v1928
    %v1997 = vtanh.pop %v1931
    %v1998 = vtanh.pop %v1933
    %v1999 = vld [vmem:[%s5] sm:$0x1]
    %v2001 = vperm.slane %v1999, 0
    %v2003 = vmul.f32 %v1935, %v2001
    %v2004 = vmul.f32 %v1936, %v2001
    %v2005 = vmul.f32 %v1937, %v2001
    %v2006 = vmul.f32 %v1938, %v2001
    %v2007 = vmul.f32 %v1939, %v2001
    %v2008 = vmul.f32 %v1940, %v2001
    %v2009 = vmul.f32 %v1941, %v2001
    %v2010 = vmul.f32 %v1942, %v2001
    %v2011 = vmul.f32 %v1943, %v2001
    %v2012 = vmul.f32 %v1944, %v2001
    %v2013 = vmul.f32 %v1945, %v2001
    %v2014 = vmul.f32 %v1946, %v2001
    %v2015 = vmul.f32 %v1947, %v2001
    %v2016 = vmul.f32 %v1948, %v2001
    %v2017 = vmul.f32 %v1949, %v2001
    %v2018 = vmul.f32 %v1950, %v2001
    %v2019 = vmul.f32 %v1951, %v2001
    %v2020 = vmul.f32 %v1952, %v2001
    %v2021 = vmul.f32 %v1953, %v2001
    %v2022 = vmul.f32 %v1954, %v2001
    %v2023 = vmul.f32 %v1955, %v2001
    %v2024 = vmul.f32 %v1956, %v2001
    %v2025 = vmul.f32 %v1957, %v2001
    %v2026 = vmul.f32 %v1958, %v2001
    %v2027 = vmul.f32 %v1959, %v2001
    %v2028 = vmul.f32 %v1960, %v2001
    %v2029 = vmul.f32 %v1961, %v2001
    %v2030 = vmul.f32 %v1962, %v2001
    %v2031 = vmul.f32 %v1963, %v2001
    %v2032 = vmul.f32 %v1964, %v2001
    %v2033 = vmul.f32 %v1965, %v2001
    %v2034 = vmul.f32 %v1966, %v2001
    %v2035 = vmul.f32 %v1967, %v2001
    %v2036 = vmul.f32 %v1968, %v2001
    %v2037 = vmul.f32 %v1969, %v2001
    %v2038 = vmul.f32 %v1970, %v2001
    %v2039 = vmul.f32 %v1971, %v2001
    %v2040 = vmul.f32 %v1972, %v2001
    %v2041 = vmul.f32 %v1973, %v2001
    %v2042 = vmul.f32 %v1974, %v2001
    %v2043 = vmul.f32 %v1975, %v2001
    %v2044 = vmul.f32 %v1976, %v2001
    %v2045 = vmul.f32 %v1977, %v2001
    %v2046 = vmul.f32 %v1978, %v2001
    %v2047 = vmul.f32 %v1979, %v2001
    %v2048 = vmul.f32 %v1980, %v2001
    %v2049 = vmul.f32 %v1981, %v2001
    %v2050 = vmul.f32 %v1982, %v2001
    %v2051 = vmul.f32 %v1983, %v2001
    %v2052 = vmul.f32 %v1984, %v2001
    %v2053 = vmul.f32 %v1985, %v2001
    %v2054 = vmul.f32 %v1986, %v2001
    %v2055 = vmul.f32 %v1987, %v2001
    %v2056 = vmul.f32 %v1988, %v2001
    %v2057 = vmul.f32 %v1989, %v2001
    %v2058 = vmul.f32 %v1990, %v2001
    %v2059 = vmul.f32 %v1991, %v2001
    %v2060 = vmul.f32 %v1992, %v2001
    %v2061 = vmul.f32 %v1993, %v2001
    %v2062 = vmul.f32 %v1994, %v2001
    %v2063 = vmul.f32 %v1995, %v2001
    %v2064 = vmul.f32 %v1996, %v2001
    %v2065 = vmul.f32 %v1997, %v2001
    %v2066 = vmul.f32 %v1998, %v2001
    %2067 = vadd.xlane.f32.xlu0 %v2003
    %v2068 = vpop.xlane.xlu0 %2067
    %2069 = vadd.xlane.f32.xlu0 %v2004
    %v2070 = vpop.xlane.xlu0 %2069
    %2071 = vadd.xlane.f32.xlu0 %v2005
    %v2072 = vpop.xlane.xlu0 %2071
    %2073 = vadd.xlane.f32.xlu0 %v2006
    %v2074 = vpop.xlane.xlu0 %2073
    %2075 = vadd.xlane.f32.xlu0 %v2007
    %v2076 = vpop.xlane.xlu0 %2075
    %2077 = vadd.xlane.f32.xlu0 %v2008
    %v2078 = vpop.xlane.xlu0 %2077
    %2079 = vadd.xlane.f32.xlu0 %v2009
    %v2080 = vpop.xlane.xlu0 %2079
    %2081 = vadd.xlane.f32.xlu0 %v2010
    %v2082 = vpop.xlane.xlu0 %2081
    %2083 = vadd.xlane.f32.xlu0 %v2011
    %v2084 = vpop.xlane.xlu0 %2083
    %2085 = vadd.xlane.f32.xlu0 %v2012
    %v2086 = vpop.xlane.xlu0 %2085
    %2087 = vadd.xlane.f32.xlu0 %v2013
    %v2088 = vpop.xlane.xlu0 %2087
    %2089 = vadd.xlane.f32.xlu0 %v2014
    %v2090 = vpop.xlane.xlu0 %2089
    %2091 = vadd.xlane.f32.xlu0 %v2015
    %v2092 = vpop.xlane.xlu0 %2091
    %2093 = vadd.xlane.f32.xlu0 %v2016
    %v2094 = vpop.xlane.xlu0 %2093
    %2095 = vadd.xlane.f32.xlu0 %v2017
    %v2096 = vpop.xlane.xlu0 %2095
    %2097 = vadd.xlane.f32.xlu0 %v2018
    %v2098 = vpop.xlane.xlu0 %2097
    %2099 = vadd.xlane.f32.xlu0 %v2019
    %v2100 = vpop.xlane.xlu0 %2099
    %2101 = vadd.xlane.f32.xlu0 %v2020
    %v2102 = vpop.xlane.xlu0 %2101
    %2103 = vadd.xlane.f32.xlu0 %v2021
    %v2104 = vpop.xlane.xlu0 %2103
    %2105 = vadd.xlane.f32.xlu0 %v2022
    %v2106 = vpop.xlane.xlu0 %2105
    %2107 = vadd.xlane.f32.xlu0 %v2023
    %v2108 = vpop.xlane.xlu0 %2107
    %2109 = vadd.xlane.f32.xlu0 %v2024
    %v2110 = vpop.xlane.xlu0 %2109
    %2111 = vadd.xlane.f32.xlu0 %v2025
    %v2112 = vpop.xlane.xlu0 %2111
    %2113 = vadd.xlane.f32.xlu0 %v2026
    %v2114 = vpop.xlane.xlu0 %2113
    %2115 = vadd.xlane.f32.xlu0 %v2027
    %v2116 = vpop.xlane.xlu0 %2115
    %2117 = vadd.xlane.f32.xlu0 %v2028
    %v2118 = vpop.xlane.xlu0 %2117
    %2119 = vadd.xlane.f32.xlu0 %v2029
    %v2120 = vpop.xlane.xlu0 %2119
    %2121 = vadd.xlane.f32.xlu0 %v2030
    %v2122 = vpop.xlane.xlu0 %2121
    %2123 = vadd.xlane.f32.xlu0 %v2031
    %v2124 = vpop.xlane.xlu0 %2123
    %2125 = vadd.xlane.f32.xlu0 %v2032
    %v2126 = vpop.xlane.xlu0 %2125
    %2127 = vadd.xlane.f32.xlu0 %v2033
    %v2128 = vpop.xlane.xlu0 %2127
    %2129 = vadd.xlane.f32.xlu0 %v2034
    %v2130 = vpop.xlane.xlu0 %2129
    %2131 = vadd.xlane.f32.xlu0 %v2035
    %v2132 = vpop.xlane.xlu0 %2131
    %2133 = vadd.xlane.f32.xlu0 %v2036
    %v2134 = vpop.xlane.xlu0 %2133
    %2135 = vadd.xlane.f32.xlu0 %v2037
    %v2136 = vpop.xlane.xlu0 %2135
    %2137 = vadd.xlane.f32.xlu0 %v2038
    %v2138 = vpop.xlane.xlu0 %2137
    %2139 = vadd.xlane.f32.xlu0 %v2039
    %v2140 = vpop.xlane.xlu0 %2139
    %2141 = vadd.xlane.f32.xlu0 %v2040
    %v2142 = vpop.xlane.xlu0 %2141
    %2143 = vadd.xlane.f32.xlu0 %v2041
    %v2144 = vpop.xlane.xlu0 %2143
    %2145 = vadd.xlane.f32.xlu0 %v2042
    %v2146 = vpop.xlane.xlu0 %2145
    %2147 = vadd.xlane.f32.xlu0 %v2043
    %v2148 = vpop.xlane.xlu0 %2147
    %2149 = vadd.xlane.f32.xlu0 %v2044
    %v2150 = vpop.xlane.xlu0 %2149
    %2151 = vadd.xlane.f32.xlu0 %v2045
    %v2152 = vpop.xlane.xlu0 %2151
    %2153 = vadd.xlane.f32.xlu0 %v2046
    %v2154 = vpop.xlane.xlu0 %2153
    %2155 = vadd.xlane.f32.xlu0 %v2047
    %v2156 = vpop.xlane.xlu0 %2155
    %2157 = vadd.xlane.f32.xlu0 %v2048
    %v2158 = vpop.xlane.xlu0 %2157
    %2159 = vadd.xlane.f32.xlu0 %v2049
    %v2160 = vpop.xlane.xlu0 %2159
    %2161 = vadd.xlane.f32.xlu0 %v2050
    %v2162 = vpop.xlane.xlu0 %2161
    %2163 = vadd.xlane.f32.xlu0 %v2051
    %v2164 = vpop.xlane.xlu0 %2163
    %2165 = vadd.xlane.f32.xlu0 %v2052
    %v2166 = vpop.xlane.xlu0 %2165
    %2167 = vadd.xlane.f32.xlu0 %v2053
    %v2168 = vpop.xlane.xlu0 %2167
    %2169 = vadd.xlane.f32.xlu0 %v2054
    %v2170 = vpop.xlane.xlu0 %2169
    %2171 = vadd.xlane.f32.xlu0 %v2055
    %v2172 = vpop.xlane.xlu0 %2171
    %2173 = vadd.xlane.f32.xlu0 %v2056
    %v2174 = vpop.xlane.xlu0 %2173
    %2175 = vadd.xlane.f32.xlu0 %v2057
    %v2176 = vpop.xlane.xlu0 %2175
    %2177 = vadd.xlane.f32.xlu0 %v2058
    %v2178 = vpop.xlane.xlu0 %2177
    %2179 = vadd.xlane.f32.xlu0 %v2059
    %v2180 = vpop.xlane.xlu0 %2179
    %2181 = vadd.xlane.f32.xlu0 %v2060
    %v2182 = vpop.xlane.xlu0 %2181
    %2183 = vadd.xlane.f32.xlu0 %v2061
    %v2184 = vpop.xlane.xlu0 %2183
    %2185 = vadd.xlane.f32.xlu0 %v2062
    %v2186 = vpop.xlane.xlu0 %2185
    %2187 = vadd.xlane.f32.xlu0 %v2063
    %v2188 = vpop.xlane.xlu0 %2187
    %2189 = vadd.xlane.f32.xlu0 %v2064
    %v2190 = vpop.xlane.xlu0 %2189
    %2191 = vadd.xlane.f32.xlu0 %v2065
    %v2192 = vpop.xlane.xlu0 %2191
    %2193 = vadd.xlane.f32.xlu0 %v2066
    %v2194 = vpop.xlane.xlu0 %2193
    %2195 = vxpose.xlu0.b32.start [1/16] %v2068, 128
    %2196 = vxpose.xlu0.b32.cont [2/16] %v2070, 128
    %2197 = vxpose.xlu0.b32.cont [3/16] %v2072, 128
    %2198 = vxpose.xlu0.b32.cont [4/16] %v2074, 128
    %2199 = vxpose.xlu0.b32.cont [5/16] %v2076, 128
    %2200 = vxpose.xlu0.b32.cont [6/16] %v2078, 128
    %2201 = vxpose.xlu0.b32.cont [7/16] %v2080, 128
    %2202 = vxpose.xlu0.b32.cont [8/16] %v2082, 128
    %2203 = vxpose.xlu0.b32.cont [9/16] %v2084, 128
    %2204 = vxpose.xlu0.b32.cont [10/16] %v2086, 128
    %2205 = vxpose.xlu0.b32.cont [11/16] %v2088, 128
    %2206 = vxpose.xlu0.b32.cont [12/16] %v2090, 128
    %2207 = vxpose.xlu0.b32.cont [13/16] %v2092, 128
    %2208 = vxpose.xlu0.b32.cont [14/16] %v2094, 128
    %2209 = vxpose.xlu0.b32.cont [15/16] %v2096, 128
    %2210 = vxpose.xlu0.b32.end [16/16] %v2098, 128
    %v2211 = vpop.trf.xlu0
    %v2212 = vpop.trf.xlu0
    %v2213 = vpop.trf.xlu0
    %v2214 = vpop.trf.xlu0
    %v2215 = vpop.trf.xlu0
    %v2216 = vpop.trf.xlu0
    %v2217 = vpop.trf.xlu0
    %v2218 = vpop.trf.xlu0
    %v2219 = vpop.trf.xlu0
    %v2220 = vpop.trf.xlu0
    %v2221 = vpop.trf.xlu0
    %v2222 = vpop.trf.xlu0
    %v2223 = vpop.trf.xlu0
    %v2224 = vpop.trf.xlu0
    %v2225 = vpop.trf.xlu0
    %v2226 = vpop.trf.xlu0
    %2227 = vxpose.xlu0.b32.start [1/16] %v2100, 128
    %2228 = vxpose.xlu0.b32.cont [2/16] %v2102, 128
    %2229 = vxpose.xlu0.b32.cont [3/16] %v2104, 128
    %2230 = vxpose.xlu0.b32.cont [4/16] %v2106, 128
    %2231 = vxpose.xlu0.b32.cont [5/16] %v2108, 128
    %2232 = vxpose.xlu0.b32.cont [6/16] %v2110, 128
    %2233 = vxpose.xlu0.b32.cont [7/16] %v2112, 128
    %2234 = vxpose.xlu0.b32.cont [8/16] %v2114, 128
    %2235 = vxpose.xlu0.b32.cont [9/16] %v2116, 128
    %2236 = vxpose.xlu0.b32.cont [10/16] %v2118, 128
    %2237 = vxpose.xlu0.b32.cont [11/16] %v2120, 128
    %2238 = vxpose.xlu0.b32.cont [12/16] %v2122, 128
    %2239 = vxpose.xlu0.b32.cont [13/16] %v2124, 128
    %2240 = vxpose.xlu0.b32.cont [14/16] %v2126, 128
    %2241 = vxpose.xlu0.b32.cont [15/16] %v2128, 128
    %2242 = vxpose.xlu0.b32.end [16/16] %v2130, 128
    %v2243 = vpop.trf.xlu0
    %v2244 = vpop.trf.xlu0
    %v2245 = vpop.trf.xlu0
    %v2246 = vpop.trf.xlu0
    %v2247 = vpop.trf.xlu0
    %v2248 = vpop.trf.xlu0
    %v2249 = vpop.trf.xlu0
    %v2250 = vpop.trf.xlu0
    %v2251 = vpop.trf.xlu0
    %v2252 = vpop.trf.xlu0
    %v2253 = vpop.trf.xlu0
    %v2254 = vpop.trf.xlu0
    %v2255 = vpop.trf.xlu0
    %v2256 = vpop.trf.xlu0
    %v2257 = vpop.trf.xlu0
    %v2258 = vpop.trf.xlu0
    %2259 = vxpose.xlu0.b32.start [1/16] %v2132, 128
    %2260 = vxpose.xlu0.b32.cont [2/16] %v2134, 128
    %2261 = vxpose.xlu0.b32.cont [3/16] %v2136, 128
    %2262 = vxpose.xlu0.b32.cont [4/16] %v2138, 128
    %2263 = vxpose.xlu0.b32.cont [5/16] %v2140, 128
    %2264 = vxpose.xlu0.b32.cont [6/16] %v2142, 128
    %2265 = vxpose.xlu0.b32.cont [7/16] %v2144, 128
    %2266 = vxpose.xlu0.b32.cont [8/16] %v2146, 128
    %2267 = vxpose.xlu0.b32.cont [9/16] %v2148, 128
    %2268 = vxpose.xlu0.b32.cont [10/16] %v2150, 128
    %2269 = vxpose.xlu0.b32.cont [11/16] %v2152, 128
    %2270 = vxpose.xlu0.b32.cont [12/16] %v2154, 128
    %2271 = vxpose.xlu0.b32.cont [13/16] %v2156, 128
    %2272 = vxpose.xlu0.b32.cont [14/16] %v2158, 128
    %2273 = vxpose.xlu0.b32.cont [15/16] %v2160, 128
    %2274 = vxpose.xlu0.b32.end [16/16] %v2162, 128
    %v2275 = vpop.trf.xlu0
    %v2276 = vpop.trf.xlu0
    %v2277 = vpop.trf.xlu0
    %v2278 = vpop.trf.xlu0
    %v2279 = vpop.trf.xlu0
    %v2280 = vpop.trf.xlu0
    %v2281 = vpop.trf.xlu0
    %v2282 = vpop.trf.xlu0
    %v2283 = vpop.trf.xlu0
    %v2284 = vpop.trf.xlu0
    %v2285 = vpop.trf.xlu0
    %v2286 = vpop.trf.xlu0
    %v2287 = vpop.trf.xlu0
    %v2288 = vpop.trf.xlu0
    %v2289 = vpop.trf.xlu0
    %v2290 = vpop.trf.xlu0
    %2291 = vxpose.xlu0.b32.start [1/16] %v2164, 128
    %2292 = vxpose.xlu0.b32.cont [2/16] %v2166, 128
    %2293 = vxpose.xlu0.b32.cont [3/16] %v2168, 128
    %2294 = vxpose.xlu0.b32.cont [4/16] %v2170, 128
    %2295 = vxpose.xlu0.b32.cont [5/16] %v2172, 128
    %2296 = vxpose.xlu0.b32.cont [6/16] %v2174, 128
    %2297 = vxpose.xlu0.b32.cont [7/16] %v2176, 128
    %2298 = vxpose.xlu0.b32.cont [8/16] %v2178, 128
    %2299 = vxpose.xlu0.b32.cont [9/16] %v2180, 128
    %2300 = vxpose.xlu0.b32.cont [10/16] %v2182, 128
    %2301 = vxpose.xlu0.b32.cont [11/16] %v2184, 128
    %2302 = vxpose.xlu0.b32.cont [12/16] %v2186, 128
    %2303 = vxpose.xlu0.b32.cont [13/16] %v2188, 128
    %2304 = vxpose.xlu0.b32.cont [14/16] %v2190, 128
    %2305 = vxpose.xlu0.b32.cont [15/16] %v2192, 128
    %2306 = vxpose.xlu0.b32.end [16/16] %v2194, 128
    %v2307 = vpop.trf.xlu0
    %v2308 = vpop.trf.xlu0
    %v2309 = vpop.trf.xlu0
    %v2310 = vpop.trf.xlu0
    %v2311 = vpop.trf.xlu0
    %v2312 = vpop.trf.xlu0
    %v2313 = vpop.trf.xlu0
    %v2314 = vpop.trf.xlu0
    %v2315 = vpop.trf.xlu0
    %v2316 = vpop.trf.xlu0
    %v2317 = vpop.trf.xlu0
    %v2318 = vpop.trf.xlu0
    %v2319 = vpop.trf.xlu0
    %v2320 = vpop.trf.xlu0
    %v2321 = vpop.trf.xlu0
    %v2322 = vpop.trf.xlu0
    %s2323 = sld [smem:[#allocation2]]
    %v2324 = vstv %s2323
    %v2325 = vadd.f32 %v2211, %v2324
    %v2326 = vadd.f32 %v2243, %v2324
    %v2327 = vadd.f32 %v2275, %v2324
    %v2328 = vadd.f32 %v2307, %v2324
    %v2329 = vxor.u32 %v2325, 2147483648
    %v2330 = vxor.u32 %v2326, 2147483648
    %v2331 = vxor.u32 %v2327, 2147483648
    %v2332 = vxor.u32 %v2328, 2147483648
    %v2333 = vmul.f32 %v2329, 1.442695
    %v2334 = vpow.pop %v2333
    %v2335 = vmul.f32 %v2330, 1.442695
    %v2336 = vpow.pop %v2335
    %v2337 = vmul.f32 %v2331, 1.442695
    %v2338 = vpow.pop %v2337
    %v2339 = vmul.f32 %v2332, 1.442695
    %v2340 = vpow.pop %v2339
    %v2341 = vadd.f32 %v2334, 1.0
    %v2342 = vadd.f32 %v2336, 1.0
    %v2343 = vadd.f32 %v2338, 1.0
    %v2344 = vadd.f32 %v2340, 1.0
    %v2345 = vrcp.pop %v2341
    %v2346 = vmul.f32 %v2341, %v2345
    %v2347 = vsub.f32 1.0, %v2346
    %v2348 = vmul.f32 %v2345, %v2347
    %v2349 = vadd.f32 %v2345, %v2348
    %vm2350 = vweird.f32 %v2341
    %vm2351 = vweird.f32 %v2345
    %vm2352 = vmor %vm2350, %vm2351
    %v2353 = vsel %vm2352, %v2345, %v2349
    %v2354 = vand.u32 2147483647, %v2341
    %vm2355 = vcmp.eq.f32.partialorder %v2354, 8.507059e+37
    %v2356 = vand.u32 %v2341, 2147483648
    %v2357 = vor.u32 1.1754944e-38, %v2356
    %v2358 = vsel %vm2355, %v2357, %v2353
    %v2359 = vmul.f32 1.0, %v2358
    %v2360 = vrcp.pop %v2342
    %v2361 = vmul.f32 %v2342, %v2360
    %v2362 = vsub.f32 1.0, %v2361
    %v2363 = vmul.f32 %v2360, %v2362
    %v2364 = vadd.f32 %v2360, %v2363
    %vm2365 = vweird.f32 %v2342
    %vm2366 = vweird.f32 %v2360
    %vm2367 = vmor %vm2365, %vm2366
    %v2368 = vsel %vm2367, %v2360, %v2364
    %v2369 = vand.u32 2147483647, %v2342
    %vm2370 = vcmp.eq.f32.partialorder %v2369, 8.507059e+37
    %v2371 = vand.u32 %v2342, 2147483648
    %v2372 = vor.u32 1.1754944e-38, %v2371
    %v2373 = vsel %vm2370, %v2372, %v2368
    %v2374 = vmul.f32 1.0, %v2373
    %v2375 = vrcp.pop %v2343
    %v2376 = vmul.f32 %v2343, %v2375
    %v2377 = vsub.f32 1.0, %v2376
    %v2378 = vmul.f32 %v2375, %v2377
    %v2379 = vadd.f32 %v2375, %v2378
    %vm2380 = vweird.f32 %v2343
    %vm2381 = vweird.f32 %v2375
    %vm2382 = vmor %vm2380, %vm2381
    %v2383 = vsel %vm2382, %v2375, %v2379
    %v2384 = vand.u32 2147483647, %v2343
    %vm2385 = vcmp.eq.f32.partialorder %v2384, 8.507059e+37
    %v2386 = vand.u32 %v2343, 2147483648
    %v2387 = vor.u32 1.1754944e-38, %v2386
    %v2388 = vsel %vm2385, %v2387, %v2383
    %v2389 = vmul.f32 1.0, %v2388
    %v2390 = vrcp.pop %v2344
    %v2391 = vmul.f32 %v2344, %v2390
    %v2392 = vsub.f32 1.0, %v2391
    %v2393 = vmul.f32 %v2390, %v2392
    %v2394 = vadd.f32 %v2390, %v2393
    %vm2395 = vweird.f32 %v2344
    %vm2396 = vweird.f32 %v2390
    %vm2397 = vmor %vm2395, %vm2396
    %v2398 = vsel %vm2397, %v2390, %v2394
    %v2399 = vand.u32 2147483647, %v2344
    %vm2400 = vcmp.eq.f32.partialorder %v2399, 8.507059e+37
    %v2401 = vand.u32 %v2344, 2147483648
    %v2402 = vor.u32 1.1754944e-38, %v2401
    %v2403 = vsel %vm2400, %v2402, %v2398
    %v2404 = vmul.f32 1.0, %v2403
    %v2409 = vrot.slane %v2374, 7
    %v2410 = vrot.slane %v2389, 6
    %v2411 = vrot.slane %v2404, 5
    %vm2412 = vcmask 1040384
    %v2413 = vsel %vm2412, %v2359, %v2409
    %vm2414 = vcmask 1042434
    %v2415 = vsel %vm2414, %v2410, %v2411
    %vm2416 = vcmask 1041408
    %v2417 = vsel %vm2416, %v2413, %v2415
    %v2419 = vlaneseq
    %vm2420 = vcmp.ge.s32.totalorder %v2419, 0
    %vm2421 = vcmp.lt.s32.totalorder %v2419, 512
    %vm2422 = vmand %vm2420, %vm2421
    %2423 = vst.msk [vmem:[#allocation3] sm:$0xf] %vm2422, %v2417
    // Predicated region
    $region30: #{tpu_custom_call.1} parent=1 // pred_check
      _
    $region31: #{tpu_custom_call.1} parent=1 // pred_check_branch
      %2425 = sbr.rel (0) target = $region33
    $region32: #{tpu_custom_call.1} parent=1 // pred_region
      %2427 = vsyncadd [#allocation4], 0
      %s2429 = sshll.u32 [#allocation3], 4
      %s2430 = int_to_ptr.vmem [resolvable:$true] %s2429
      %s2431 = sshll.u32 %s7, 4
      %s2432 = int_to_ptr.hbm [resolvable:$true] %s2431
      %2434 = dma.vmem_to_hbm [thread:$0]  %s2430, 64, %s2432, [#allocation4]
    $region33: #{tpu_custom_call.1} parent=1 // pred_fallthru
      _
    // Predicated region
    $region34: #{tpu_custom_call.1} parent=1 // pred_check
      _
    $region35: #{tpu_custom_call.1} parent=1 // pred_check_branch
      %2436 = sbr.rel (0) target = $region37
    $region36: #{tpu_custom_call.1} parent=1 // pred_region
      %2438 = dma.done [#allocation4], 64
    $region37: #{tpu_custom_call.1} parent=1 // pred_fallthru
      _
    %2439 = vsyncpa [#allocation4], 1

</llo_original>
